<compile_context>
chip_gen: v5e
topology: v5e:2x2
jax: 0.10.0
libtpu: 0.0.40
codegen_flags: <defaults>
</compile_context>

<pallas_src>
import functools
import math

import jax
import jax.numpy as jnp
import numpy as np
from jax.experimental import pallas as pl
from jax.experimental.pallas import tpu as pltpu

_LN_EPS = 1e-5  # torch.nn.LayerNorm default eps


def _layer_norm_f32(x):
    # LayerNorm(dim, elementwise_affine=False): normalize over last axis, f32 math.
    x = x.astype(jnp.float32)
    mu = jnp.mean(x, axis=-1, keepdims=True)
    var = jnp.mean((x - mu) ** 2, axis=-1, keepdims=True)
    return (x - mu) * jax.lax.rsqrt(var + _LN_EPS)


def _gelu_exact(x):
    # torch.nn.GELU() default == exact erf-based GELU.
    return 0.5 * x * (1.0 + jax.lax.erf(x * 0.7071067811865476))


def rev_layer_kernel(xq_ref, xkv_ref, pad_ref,
                     wq_ref, bq_ref, wk_ref, bk_ref, wv_ref, bv_ref,
                     wo_ref, bo_ref, w1_ref, b1_ref, w2_ref, b2_ref,
                     out_ref,
                     k_scr, v_scr,
                     *, num_heads, f_chunk):
    qi = pl.program_id(1)

    D = wq_ref.shape[0]
    F = w1_ref.shape[1]
    tq = xq_ref.shape[1]
    S = xkv_ref.shape[1]
    H = num_heads
    Dh = D // H
    mm_dtype = wq_ref.dtype                 # matmul operand dtype (bf16 or f32)
    scale = 1.0 / math.sqrt(Dh)

    # ---- K/V over the full sequence: computed once per batch tile (qi == 0),
    #      cached in VMEM scratch in head-major layout. ------------------------
    @pl.when(qi == 0)
    def _compute_kv():
        x2_full = xkv_ref[0, :, D:]                               # (S, D)
        h = _layer_norm_f32(x2_full).astype(mm_dtype)
        k = jnp.dot(h, wk_ref[...], preferred_element_type=jnp.float32) + bk_ref[...]
        v = jnp.dot(h, wv_ref[...], preferred_element_type=jnp.float32) + bv_ref[...]
        k_scr[...] = jnp.transpose(k.reshape(S, H, Dh), (1, 0, 2)).astype(k_scr.dtype)
        v_scr[...] = jnp.transpose(v.reshape(S, H, Dh), (1, 0, 2)).astype(v_scr.dtype)

    # ---- f(X2): PreNorm -> fused multi-head self-attention --------------------
    x1 = xq_ref[0, :, :D].astype(jnp.float32)                     # (tq, D)
    x2 = xq_ref[0, :, D:]                                         # (tq, D)

    h_q = _layer_norm_f32(x2).astype(mm_dtype)
    q = jnp.dot(h_q, wq_ref[...], preferred_element_type=jnp.float32) + bq_ref[...]
    qh = jnp.transpose(q.reshape(tq, H, Dh), (1, 0, 2)).astype(mm_dtype)  # (H,tq,Dh)

    kh = k_scr[...]                                               # (H, S, Dh)
    vh = v_scr[...]                                               # (H, S, Dh)

    # Scores for all heads in one batched MXU call; f32 accumulation.
    s = jnp.einsum('hqd,hkd->hqk', qh, kh,
                   preferred_element_type=jnp.float32) * scale    # (H, tq, S)
    # key_padding_mask: 1 => masked (large negative), kept in f32.
    pad_bias = pad_ref[0].astype(jnp.float32) * (-1e30)           # (1, S)
    s = s + pad_bias
    s = s - jnp.max(s, axis=-1, keepdims=True)
    p = jnp.exp(s)
    p = p * pl.reciprocal(jnp.sum(p, axis=-1, keepdims=True), approx=True)

    ctx = jnp.einsum('hqk,hkd->hqd', p.astype(mm_dtype), vh,
                     preferred_element_type=jnp.float32)          # (H, tq, Dh)
    ctx = jnp.transpose(ctx, (1, 0, 2)).reshape(tq, D)            # (tq, D) f32
    attn = (jnp.dot(ctx.astype(mm_dtype), wo_ref[...],
                    preferred_element_type=jnp.float32) + bo_ref[...])

    y1 = x1 + attn                                                # Y1 = X1 + f(X2)

    # ---- g(Y1): PreNorm -> FFN, tiled over the hidden (F) dimension ----------
    g_in = _layer_norm_f32(y1).astype(mm_dtype)
    ffn = jnp.zeros((tq, D), jnp.float32)
    n_chunks = F // f_chunk
    for c in range(n_chunks):                 # static, small trip count
        lo, hi = c * f_chunk, (c + 1) * f_chunk
        u = _gelu_exact(jnp.dot(g_in, w1_ref[:, lo:hi],
                                preferred_element_type=jnp.float32)
                        + b1_ref[:, lo:hi])
        ffn = ffn + jnp.dot(u.astype(mm_dtype), w2_ref[lo:hi, :],
                            preferred_element_type=jnp.float32)
    ffn = ffn + b2_ref[...]

    y2 = x2.astype(jnp.float32) + ffn                             # Y2 = X2 + g(Y1)

    # Write both halves of the lane-dense (tq, 2D) output block (concat fused).
    out_ref[0, :, :D] = y1.astype(out_ref.dtype)
    out_ref[0, :, D:] = y2.astype(out_ref.dtype)


def rev_transformer_encoder_layer(x, encoder_padding_mask, params, num_heads,
                                  *, q_block=None, ffn_block=None):
    """x: (S, B, 2*D); encoder_padding_mask: (B, S) with 1 == padded key."""
    S, B, two_d = x.shape
    D = two_d // 2
    Dh = D // num_heads
    F = params['w1'].shape[1]

    # q-tile: must divide S and be a multiple of 8 (or equal S).
    tq = q_block if q_block is not None else min(S, 256)
    if S % tq != 0 or (tq != S and tq % 8 != 0):
        tq = S
    # FFN hidden chunk: must divide F and be lane-aligned (or equal F).
    fc = ffn_block if ffn_block is not None else min(F, 512)
    if F % fc != 0 or (fc != F and fc % 128 != 0):
        fc = F

    xb = jnp.transpose(x, (1, 0, 2))                              # (B, S, 2D)
    pad = encoder_padding_mask.astype(jnp.float32).reshape(B, 1, S)

    mm_dtype = params['wq'].dtype
    weight_order = ('wq', 'bq', 'wk', 'bk', 'wv', 'bv', 'wo', 'bo',
                    'w1', 'b1', 'w2', 'b2')
    weights = [params[k] for k in weight_order]

    grid = (B, S // tq)

    def _w_spec(arr):
        return pl.BlockSpec(arr.shape, lambda b, q: (0, 0))       # resident weights

    in_specs = ([pl.BlockSpec((1, tq, two_d), lambda b, q: (b, q, 0)),   # q-tile view
                 pl.BlockSpec((1, S, two_d), lambda b, q: (b, 0, 0)),    # full-seq (K/V)
                 pl.BlockSpec((1, 1, S), lambda b, q: (b, 0, 0))]        # pad mask
                + [_w_spec(w) for w in weights])
    out_specs = pl.BlockSpec((1, tq, two_d), lambda b, q: (b, q, 0))

    # Rough VMEM budget: double-buffered IO + resident weights + K/V scratch +
    # headroom for in-register intermediates; clamped to fit v7x's 64 MiB.
    xbytes = xb.dtype.itemsize
    mmbytes = jnp.dtype(mm_dtype).itemsize
    io_bytes = 2 * ((tq + S) * two_d + S) * xbytes + 2 * tq * two_d * xbytes
    w_bytes = sum(int(np.prod(w.shape)) * w.dtype.itemsize for w in weights)
    scr_bytes = 2 * S * D * mmbytes
    interm = 4 * (3 * num_heads * tq * S + 2 * tq * fc + 8 * tq * D)
    vmem_limit = int(min(max(2 * (io_bytes + w_bytes + scr_bytes + interm)
                             + (8 << 20), 32 << 20), 64 << 20))

    kernel = functools.partial(rev_layer_kernel, num_heads=num_heads, f_chunk=fc)

    out = pl.pallas_call(
        kernel,
        out_shape=jax.ShapeDtypeStruct((B, S, two_d), x.dtype),
        grid=grid,
        in_specs=in_specs,
        out_specs=out_specs,
        scratch_shapes=[pltpu.VMEM((num_heads, S, Dh), mm_dtype),   # K cache
                        pltpu.VMEM((num_heads, S, Dh), mm_dtype)],  # V cache
        compiler_params=pltpu.CompilerParams(
            dimension_semantics=("parallel", "arbitrary"),
            vmem_limit_bytes=vmem_limit),
    )(xb, xb, pad, *weights)

    return jnp.transpose(out, (1, 0, 2))                           # (S, B, 2D)


# ----------------------------- pure-JAX reference ------------------------------
def rev_layer_reference(x, pad, p, num_heads):
    S, B, two_d = x.shape
    D = two_d // 2
    xb = jnp.transpose(x, (1, 0, 2)).astype(jnp.float32)
    x1, x2 = xb[..., :D], xb[..., D:]

    def lin(t, w, b):
        return (jnp.einsum('bsd,de->bse', t, w.astype(jnp.float32))
                + b.astype(jnp.float32)[None])

    def ln(t):
        mu = jnp.mean(t, axis=-1, keepdims=True)
        var = jnp.mean((t - mu) ** 2, axis=-1, keepdims=True)
        return (t - mu) * jax.lax.rsqrt(var + _LN_EPS)

    h = ln(x2)
    q = lin(h, p['wq'], p['bq'])
    k = lin(h, p['wk'], p['bk'])
    v = lin(h, p['wv'], p['bv'])
    Dh = D // num_heads
    scale = 1.0 / math.sqrt(Dh)
    bias = pad.astype(jnp.float32)[:, None, :] * (-1e30)
    outs = []
    for hd in range(num_heads):
        sl = slice(hd * Dh, (hd + 1) * Dh)
        s = jnp.einsum('bqd,bkd->bqk', q[..., sl] * scale, k[..., sl]) + bias
        outs.append(jnp.einsum('bqk,bkd->bqd', jax.nn.softmax(s, axis=-1), v[..., sl]))
    ctx = jnp.concatenate(outs, axis=-1)
    y1 = x1 + lin(ctx, p['wo'], p['bo'])
    u = _gelu_exact(lin(ln(y1), p['w1'], p['b1']))
    y2 = x2 + lin(u, p['w2'], p['b2'])
    out = jnp.concatenate([y1, y2], axis=-1)
    return jnp.transpose(out, (1, 0, 2))


if __name__ == "__main__":
    # Small shapes consistent with the module: seq=16, batch=2, embed_dim=128
    # (so the reversible input has 2*128 = 256 channels), 4 heads, ffn hidden=512.
    S, B, D, H, F = 16, 2, 128, 4, 512

    key = jax.random.PRNGKey(0)
    keys = jax.random.split(key, 13)

    def w(k, shape, scale=0.05):
        return jax.random.normal(k, shape, jnp.float32) * scale

    params = dict(
        wq=w(keys[0], (D, D)), bq=w(keys[1], (1, D), 0.01),
        wk=w(keys[2], (D, D)), bk=w(keys[3], (1, D), 0.01),
        wv=w(keys[4], (D, D)), bv=w(keys[5], (1, D), 0.01),
        wo=w(keys[6], (D, D)), bo=w(keys[7], (1, D), 0.01),
        w1=w(keys[8], (D, F)), b1=w(keys[9], (1, F), 0.01),
        w2=w(keys[10], (F, D)), b2=w(keys[11], (1, D), 0.01),
    )

    x = jax.random.normal(keys[12], (S, B, 2 * D), jnp.float32)
    # key_padding_mask: mask the last 3 keys of batch element 1 (1 == padded).
    encoder_padding_mask = jnp.zeros((B, S), jnp.float32).at[1, S - 3:].set(1.0)
    # TODO(synk): attn_mask / rel_attn_kv ('relative' attention) paths are not
    # implemented; only key_padding_mask is supported (the common usage).

    # float32 path (exercises 2 q-tiles per batch, K/V caching, FFN F-chunking).
    out = rev_transformer_encoder_layer(x, encoder_padding_mask, params, H,
                                        q_block=8, ffn_block=256)
    out = jax.block_until_ready(out)
    ref = rev_layer_reference(x, encoder_padding_mask, params, H)
    assert out.shape == (S, B, 2 * D)
    np.testing.assert_allclose(np.asarray(out), np.asarray(ref),
                               rtol=2e-3, atol=2e-3)

    # bf16-operand path: activations/weights bf16, f32 MXU accumulation,
    # f32 elementwise (LayerNorm / softmax / GELU).
    x_bf = x.astype(jnp.bfloat16)
    params_bf = {k: v.astype(jnp.bfloat16) for k, v in params.items()}
    out_bf = rev_transformer_encoder_layer(x_bf, encoder_padding_mask, params_bf, H,
                                           q_block=8, ffn_block=256)
    out_bf = jax.block_until_ready(out_bf)
    ref_bf = rev_layer_reference(x_bf, encoder_padding_mask, params_bf, H)
    np.testing.assert_allclose(np.asarray(out_bf.astype(jnp.float32)),
                               np.asarray(ref_bf), rtol=5e-2, atol=5e-2)

    print("KERNEL_OK")
</pallas_src>

<mosaic_0001>
module attributes {stable_mosaic.version = 11 : i64} {
  func.func @rev_layer_kernel(%arg0: i32, %arg1: i32, %arg2: memref<1x8x256xf32, #tpu.memory_space<vmem>>, %arg3: memref<1x16x256xf32, #tpu.memory_space<vmem>>, %arg4: memref<1x1x16xf32, #tpu.memory_space<vmem>>, %arg5: memref<128x128xf32, #tpu.memory_space<vmem>>, %arg6: memref<1x128xf32, #tpu.memory_space<vmem>>, %arg7: memref<128x128xf32, #tpu.memory_space<vmem>>, %arg8: memref<1x128xf32, #tpu.memory_space<vmem>>, %arg9: memref<128x128xf32, #tpu.memory_space<vmem>>, %arg10: memref<1x128xf32, #tpu.memory_space<vmem>>, %arg11: memref<128x128xf32, #tpu.memory_space<vmem>>, %arg12: memref<1x128xf32, #tpu.memory_space<vmem>>, %arg13: memref<128x512xf32, #tpu.memory_space<vmem>>, %arg14: memref<1x512xf32, #tpu.memory_space<vmem>>, %arg15: memref<512x128xf32, #tpu.memory_space<vmem>>, %arg16: memref<1x128xf32, #tpu.memory_space<vmem>>, %arg17: memref<1x8x256xf32, #tpu.memory_space<vmem>>, %arg18: memref<4x16x32xf32, #tpu.memory_space<vmem>>, %arg19: memref<4x16x32xf32, #tpu.memory_space<vmem>>) attributes {dimension_semantics = [#tpu.dimension_semantics<parallel>, #tpu.dimension_semantics<arbitrary>], iteration_bounds = array<i64: 2, 2>, scalar_prefetch = 0 : i64, scratch_operands = 2 : i64, tpu.core_type = #tpu.core_type<tc>, window_params = [{transform_indices = @transform_0, window_bounds = array<i64: 1, 8, 256>}, {transform_indices = @transform_1, window_bounds = array<i64: 1, 16, 256>}, {transform_indices = @transform_2, window_bounds = array<i64: 1, 1, 16>}, {pipeline_mode = #tpu.pipeline_mode<synchronous>, transform_indices = @transform_3, window_bounds = array<i64: 128, 128>}, {pipeline_mode = #tpu.pipeline_mode<synchronous>, transform_indices = @transform_4, window_bounds = array<i64: 1, 128>}, {pipeline_mode = #tpu.pipeline_mode<synchronous>, transform_indices = @transform_5, window_bounds = array<i64: 128, 128>}, {pipeline_mode = #tpu.pipeline_mode<synchronous>, transform_indices = @transform_6, window_bounds = array<i64: 1, 128>}, {pipeline_mode = #tpu.pipeline_mode<synchronous>, transform_indices = @transform_7, window_bounds = array<i64: 128, 128>}, {pipeline_mode = #tpu.pipeline_mode<synchronous>, transform_indices = @transform_8, window_bounds = array<i64: 1, 128>}, {pipeline_mode = #tpu.pipeline_mode<synchronous>, transform_indices = @transform_9, window_bounds = array<i64: 128, 128>}, {pipeline_mode = #tpu.pipeline_mode<synchronous>, transform_indices = @transform_10, window_bounds = array<i64: 1, 128>}, {pipeline_mode = #tpu.pipeline_mode<synchronous>, transform_indices = @transform_11, window_bounds = array<i64: 128, 512>}, {pipeline_mode = #tpu.pipeline_mode<synchronous>, transform_indices = @transform_12, window_bounds = array<i64: 1, 512>}, {pipeline_mode = #tpu.pipeline_mode<synchronous>, transform_indices = @transform_13, window_bounds = array<i64: 512, 128>}, {pipeline_mode = #tpu.pipeline_mode<synchronous>, transform_indices = @transform_14, window_bounds = array<i64: 1, 128>}, {transform_indices = @transform_15, window_bounds = array<i64: 1, 8, 256>}]} {
    %c0_i32 = arith.constant 0 : i32
    %0 = arith.cmpi eq, %arg1, %c0_i32 : i32
    %1 = arith.extui %0 : i1 to i32
    %c0_i32_0 = arith.constant 0 : i32
    %2 = arith.cmpi ne, %1, %c0_i32_0 : i32
    scf.if %2 {
      %c0_69 = arith.constant 0 : index
      %c0_70 = arith.constant 0 : index
      %c128_71 = arith.constant 128 : index
      %124 = vector.load %arg3[%c0_69, %c0_70, %c128_71] : memref<1x16x256xf32, #tpu.memory_space<vmem>>, vector<1x16x128xf32>
      %125 = vector.shape_cast %124 : vector<1x16x128xf32> to vector<16x128xf32>
      %cst_72 = arith.constant dense<0.000000e+00> : vector<16xf32>
      %126 = vector.multi_reduction <add>, %125, %cst_72 [1] : vector<16x128xf32> to vector<16xf32>
      %127 = vector.shape_cast %126 : vector<16xf32> to vector<16x1xf32>
      %cst_73 = arith.constant 1.280000e+02 : f32
      %128 = vector.broadcast %cst_73 : f32 to vector<16x1xf32>
      %129 = arith.divf %127, %128 : vector<16x1xf32>
      %130 = vector.broadcast %129 : vector<16x1xf32> to vector<16x128xf32>
      %131 = arith.subf %125, %130 : vector<16x128xf32>
      %132 = arith.mulf %131, %131 : vector<16x128xf32>
      %cst_74 = arith.constant dense<0.000000e+00> : vector<16xf32>
      %133 = vector.multi_reduction <add>, %132, %cst_74 [1] : vector<16x128xf32> to vector<16xf32>
      %134 = vector.shape_cast %133 : vector<16xf32> to vector<16x1xf32>
      %cst_75 = arith.constant 1.280000e+02 : f32
      %135 = vector.broadcast %cst_75 : f32 to vector<16x1xf32>
      %136 = arith.divf %134, %135 : vector<16x1xf32>
      %137 = vector.broadcast %129 : vector<16x1xf32> to vector<16x128xf32>
      %138 = arith.subf %125, %137 : vector<16x128xf32>
      %cst_76 = arith.constant 9.99999974E-6 : f32
      %139 = vector.broadcast %cst_76 : f32 to vector<16x1xf32>
      %140 = arith.addf %136, %139 : vector<16x1xf32>
      %141 = math.rsqrt %140 : vector<16x1xf32>
      %142 = vector.broadcast %141 : vector<16x1xf32> to vector<16x128xf32>
      %143 = arith.mulf %138, %142 : vector<16x128xf32>
      %c0_77 = arith.constant 0 : index
      %c0_78 = arith.constant 0 : index
      %144 = vector.load %arg7[%c0_77, %c0_78] : memref<128x128xf32, #tpu.memory_space<vmem>>, vector<128x128xf32>
      %cst_79 = arith.constant dense<0.000000e+00> : vector<16x128xf32>
      %145 = tpu.matmul %143, %144, %cst_79 {dimension_numbers = #tpu.dot_dimension_numbers<[1], [0], [0], [1], [0, 0, 1, 1], [], []>} : vector<16x128xf32>, vector<128x128xf32>, vector<16x128xf32> -> vector<16x128xf32>
      %c0_80 = arith.constant 0 : index
      %c0_81 = arith.constant 0 : index
      %146 = vector.load %arg8[%c0_80, %c0_81] : memref<1x128xf32, #tpu.memory_space<vmem>>, vector<1x128xf32>
      %147 = vector.broadcast %146 : vector<1x128xf32> to vector<16x128xf32>
      %148 = arith.addf %145, %147 : vector<16x128xf32>
      %c0_82 = arith.constant 0 : index
      %c0_83 = arith.constant 0 : index
      %149 = vector.load %arg9[%c0_82, %c0_83] : memref<128x128xf32, #tpu.memory_space<vmem>>, vector<128x128xf32>
      %cst_84 = arith.constant dense<0.000000e+00> : vector<16x128xf32>
      %150 = tpu.matmul %143, %149, %cst_84 {dimension_numbers = #tpu.dot_dimension_numbers<[1], [0], [0], [1], [0, 0, 1, 1], [], []>} : vector<16x128xf32>, vector<128x128xf32>, vector<16x128xf32> -> vector<16x128xf32>
      %c0_85 = arith.constant 0 : index
      %c0_86 = arith.constant 0 : index
      %151 = vector.load %arg10[%c0_85, %c0_86] : memref<1x128xf32, #tpu.memory_space<vmem>>, vector<1x128xf32>
      %152 = vector.broadcast %151 : vector<1x128xf32> to vector<16x128xf32>
      %153 = arith.addf %150, %152 : vector<16x128xf32>
      %154 = vector.shape_cast %148 : vector<16x128xf32> to vector<16x4x32xf32>
      %155 = tpu.transpose %154, [1, 0, 2] : vector<16x4x32xf32> -> vector<4x16x32xf32>
      %c0_87 = arith.constant 0 : index
      %c0_88 = arith.constant 0 : index
      %c0_89 = arith.constant 0 : index
      %156 = vector.load %arg18[%c0_87, %c0_88, %c0_89] : memref<4x16x32xf32, #tpu.memory_space<vmem>>, vector<4x16x32xf32>
      tpu.vector_store %arg18[%c0_87, %c0_88, %c0_89], %155 {strides = array<i32>} : memref<4x16x32xf32, #tpu.memory_space<vmem>>, vector<4x16x32xf32>,
      %157 = vector.shape_cast %153 : vector<16x128xf32> to vector<16x4x32xf32>
      %158 = tpu.transpose %157, [1, 0, 2] : vector<16x4x32xf32> -> vector<4x16x32xf32>
      %c0_90 = arith.constant 0 : index
      %c0_91 = arith.constant 0 : index
      %c0_92 = arith.constant 0 : index
      %159 = vector.load %arg19[%c0_90, %c0_91, %c0_92] : memref<4x16x32xf32, #tpu.memory_space<vmem>>, vector<4x16x32xf32>
      tpu.vector_store %arg19[%c0_90, %c0_91, %c0_92], %158 {strides = array<i32>} : memref<4x16x32xf32, #tpu.memory_space<vmem>>, vector<4x16x32xf32>,
    } else {
    }
    %c0 = arith.constant 0 : index
    %c0_1 = arith.constant 0 : index
    %c0_2 = arith.constant 0 : index
    %3 = vector.load %arg2[%c0, %c0_1, %c0_2] : memref<1x8x256xf32, #tpu.memory_space<vmem>>, vector<1x8x128xf32>
    %4 = vector.shape_cast %3 : vector<1x8x128xf32> to vector<8x128xf32>
    %c0_3 = arith.constant 0 : index
    %c0_4 = arith.constant 0 : index
    %c128 = arith.constant 128 : index
    %5 = vector.load %arg2[%c0_3, %c0_4, %c128] : memref<1x8x256xf32, #tpu.memory_space<vmem>>, vector<1x8x128xf32>
    %6 = vector.shape_cast %5 : vector<1x8x128xf32> to vector<8x128xf32>
    %cst = arith.constant dense<0.000000e+00> : vector<8xf32>
    %7 = vector.multi_reduction <add>, %6, %cst [1] : vector<8x128xf32> to vector<8xf32>
    %8 = vector.shape_cast %7 : vector<8xf32> to vector<8x1xf32>
    %cst_5 = arith.constant 1.280000e+02 : f32
    %9 = vector.broadcast %cst_5 : f32 to vector<8x1xf32>
    %10 = arith.divf %8, %9 : vector<8x1xf32>
    %11 = vector.broadcast %10 : vector<8x1xf32> to vector<8x128xf32>
    %12 = arith.subf %6, %11 : vector<8x128xf32>
    %13 = arith.mulf %12, %12 : vector<8x128xf32>
    %cst_6 = arith.constant dense<0.000000e+00> : vector<8xf32>
    %14 = vector.multi_reduction <add>, %13, %cst_6 [1] : vector<8x128xf32> to vector<8xf32>
    %15 = vector.shape_cast %14 : vector<8xf32> to vector<8x1xf32>
    %cst_7 = arith.constant 1.280000e+02 : f32
    %16 = vector.broadcast %cst_7 : f32 to vector<8x1xf32>
    %17 = arith.divf %15, %16 : vector<8x1xf32>
    %18 = vector.broadcast %10 : vector<8x1xf32> to vector<8x128xf32>
    %19 = arith.subf %6, %18 : vector<8x128xf32>
    %cst_8 = arith.constant 9.99999974E-6 : f32
    %20 = vector.broadcast %cst_8 : f32 to vector<8x1xf32>
    %21 = arith.addf %17, %20 : vector<8x1xf32>
    %22 = math.rsqrt %21 : vector<8x1xf32>
    %23 = vector.broadcast %22 : vector<8x1xf32> to vector<8x128xf32>
    %24 = arith.mulf %19, %23 : vector<8x128xf32>
    %c0_9 = arith.constant 0 : index
    %c0_10 = arith.constant 0 : index
    %25 = vector.load %arg5[%c0_9, %c0_10] : memref<128x128xf32, #tpu.memory_space<vmem>>, vector<128x128xf32>
    %cst_11 = arith.constant dense<0.000000e+00> : vector<8x128xf32>
    %26 = tpu.matmul %24, %25, %cst_11 {dimension_numbers = #tpu.dot_dimension_numbers<[1], [0], [0], [1], [0, 0, 1, 1], [], []>} : vector<8x128xf32>, vector<128x128xf32>, vector<8x128xf32> -> vector<8x128xf32>
    %c0_12 = arith.constant 0 : index
    %c0_13 = arith.constant 0 : index
    %27 = vector.load %arg6[%c0_12, %c0_13] : memref<1x128xf32, #tpu.memory_space<vmem>>, vector<1x128xf32>
    %28 = vector.broadcast %27 : vector<1x128xf32> to vector<8x128xf32>
    %29 = arith.addf %26, %28 : vector<8x128xf32>
    %30 = vector.shape_cast %29 : vector<8x128xf32> to vector<8x4x32xf32>
    %31 = tpu.transpose %30, [1, 0, 2] : vector<8x4x32xf32> -> vector<4x8x32xf32>
    %c0_14 = arith.constant 0 : index
    %c0_15 = arith.constant 0 : index
    %c0_16 = arith.constant 0 : index
    %32 = vector.load %arg18[%c0_14, %c0_15, %c0_16] : memref<4x16x32xf32, #tpu.memory_space<vmem>>, vector<4x16x32xf32>
    %c0_17 = arith.constant 0 : index
    %c0_18 = arith.constant 0 : index
    %c0_19 = arith.constant 0 : index
    %33 = vector.load %arg19[%c0_17, %c0_18, %c0_19] : memref<4x16x32xf32, #tpu.memory_space<vmem>>, vector<4x16x32xf32>
    "tpu.trace_start"() <{level = 10 : i32, message = "hqd,hkd->hqk"}> : () -> ()
    %cst_20 = arith.constant dense<0.000000e+00> : vector<4x8x16xf32>
    %34 = tpu.matmul %31, %32, %cst_20 {dimension_numbers = #tpu.dot_dimension_numbers<[2], [2], [1], [1], [0, 0, 0, 1, 1, 1], [0], [0]>} : vector<4x8x32xf32>, vector<4x16x32xf32>, vector<4x8x16xf32> -> vector<4x8x16xf32>
    "tpu.trace_stop"() : () -> ()
    %cst_21 = arith.constant 0.176776692 : f32
    %35 = vector.broadcast %cst_21 : f32 to vector<4x8x16xf32>
    %36 = arith.mulf %34, %35 : vector<4x8x16xf32>
    %c0_22 = arith.constant 0 : index
    %c0_23 = arith.constant 0 : index
    %c0_24 = arith.constant 0 : index
    %37 = vector.load %arg4[%c0_22, %c0_23, %c0_24] : memref<1x1x16xf32, #tpu.memory_space<vmem>>, vector<1x1x16xf32>
    %38 = vector.shape_cast %37 : vector<1x1x16xf32> to vector<1x16xf32>
    %cst_25 = arith.constant -1.000000e+30 : f32
    %39 = vector.broadcast %cst_25 : f32 to vector<1x16xf32>
    %40 = arith.mulf %38, %39 : vector<1x16xf32>
    %41 = vector.shape_cast %40 : vector<1x16xf32> to vector<1x1x16xf32>
    %42 = vector.broadcast %41 : vector<1x1x16xf32> to vector<4x8x16xf32>
    %43 = arith.addf %36, %42 : vector<4x8x16xf32>
    %cst_26 = arith.constant dense<0xFF800000> : vector<4x8xf32>
    %44 = vector.multi_reduction <maximumf>, %43, %cst_26 [2] : vector<4x8x16xf32> to vector<4x8xf32>
    %45 = vector.shape_cast %44 : vector<4x8xf32> to vector<4x8x1xf32>
    %46 = vector.broadcast %45 : vector<4x8x1xf32> to vector<4x8x16xf32>
    %47 = arith.subf %43, %46 : vector<4x8x16xf32>
    %48 = math.exp %47 : vector<4x8x16xf32>
    %cst_27 = arith.constant dense<0.000000e+00> : vector<4x8xf32>
    %49 = vector.multi_reduction <add>, %48, %cst_27 [2] : vector<4x8x16xf32> to vector<4x8xf32>
    %50 = vector.shape_cast %49 : vector<4x8xf32> to vector<4x8x1xf32>
    %51 = tpu.reciprocal %50 {approx = true} : vector<4x8x1xf32> -> vector<4x8x1xf32>
    %52 = vector.broadcast %51 : vector<4x8x1xf32> to vector<4x8x16xf32>
    %53 = arith.mulf %48, %52 : vector<4x8x16xf32>
    "tpu.trace_start"() <{level = 10 : i32, message = "hqk,hkd->hqd"}> : () -> ()
    %cst_28 = arith.constant dense<0.000000e+00> : vector<4x8x32xf32>
    %54 = tpu.matmul %53, %33, %cst_28 {dimension_numbers = #tpu.dot_dimension_numbers<[2], [1], [1], [2], [0, 0, 0, 1, 1, 2], [0], [0]>} : vector<4x8x16xf32>, vector<4x16x32xf32>, vector<4x8x32xf32> -> vector<4x8x32xf32>
    "tpu.trace_stop"() : () -> ()
    %55 = tpu.transpose %54, [1, 0, 2] : vector<4x8x32xf32> -> vector<8x4x32xf32>
    %56 = vector.shape_cast %55 : vector<8x4x32xf32> to vector<8x128xf32>
    %c0_29 = arith.constant 0 : index
    %c0_30 = arith.constant 0 : index
    %57 = vector.load %arg11[%c0_29, %c0_30] : memref<128x128xf32, #tpu.memory_space<vmem>>, vector<128x128xf32>
    %cst_31 = arith.constant dense<0.000000e+00> : vector<8x128xf32>
    %58 = tpu.matmul %56, %57, %cst_31 {dimension_numbers = #tpu.dot_dimension_numbers<[1], [0], [0], [1], [0, 0, 1, 1], [], []>} : vector<8x128xf32>, vector<128x128xf32>, vector<8x128xf32> -> vector<8x128xf32>
    %c0_32 = arith.constant 0 : index
    %c0_33 = arith.constant 0 : index
    %59 = vector.load %arg12[%c0_32, %c0_33] : memref<1x128xf32, #tpu.memory_space<vmem>>, vector<1x128xf32>
    %60 = vector.broadcast %59 : vector<1x128xf32> to vector<8x128xf32>
    %61 = arith.addf %58, %60 : vector<8x128xf32>
    %62 = arith.addf %4, %61 : vector<8x128xf32>
    %cst_34 = arith.constant dense<0.000000e+00> : vector<8xf32>
    %63 = vector.multi_reduction <add>, %62, %cst_34 [1] : vector<8x128xf32> to vector<8xf32>
    %64 = vector.shape_cast %63 : vector<8xf32> to vector<8x1xf32>
    %cst_35 = arith.constant 1.280000e+02 : f32
    %65 = vector.broadcast %cst_35 : f32 to vector<8x1xf32>
    %66 = arith.divf %64, %65 : vector<8x1xf32>
    %67 = vector.broadcast %66 : vector<8x1xf32> to vector<8x128xf32>
    %68 = arith.subf %62, %67 : vector<8x128xf32>
    %69 = arith.mulf %68, %68 : vector<8x128xf32>
    %cst_36 = arith.constant dense<0.000000e+00> : vector<8xf32>
    %70 = vector.multi_reduction <add>, %69, %cst_36 [1] : vector<8x128xf32> to vector<8xf32>
    %71 = vector.shape_cast %70 : vector<8xf32> to vector<8x1xf32>
    %cst_37 = arith.constant 1.280000e+02 : f32
    %72 = vector.broadcast %cst_37 : f32 to vector<8x1xf32>
    %73 = arith.divf %71, %72 : vector<8x1xf32>
    %74 = vector.broadcast %66 : vector<8x1xf32> to vector<8x128xf32>
    %75 = arith.subf %62, %74 : vector<8x128xf32>
    %cst_38 = arith.constant 9.99999974E-6 : f32
    %76 = vector.broadcast %cst_38 : f32 to vector<8x1xf32>
    %77 = arith.addf %73, %76 : vector<8x1xf32>
    %78 = math.rsqrt %77 : vector<8x1xf32>
    %79 = vector.broadcast %78 : vector<8x1xf32> to vector<8x128xf32>
    %80 = arith.mulf %75, %79 : vector<8x128xf32>
    %cst_39 = arith.constant 0.000000e+00 : f32
    %81 = vector.broadcast %cst_39 : f32 to vector<8x128xf32>
    %c0_40 = arith.constant 0 : index
    %c0_41 = arith.constant 0 : index
    %82 = vector.load %arg13[%c0_40, %c0_41] : memref<128x512xf32, #tpu.memory_space<vmem>>, vector<128x256xf32>
    %cst_42 = arith.constant dense<0.000000e+00> : vector<8x256xf32>
    %83 = tpu.matmul %80, %82, %cst_42 {dimension_numbers = #tpu.dot_dimension_numbers<[1], [0], [0], [1], [0, 0, 1, 1], [], []>} : vector<8x128xf32>, vector<128x256xf32>, vector<8x256xf32> -> vector<8x256xf32>
    %c0_43 = arith.constant 0 : index
    %c0_44 = arith.constant 0 : index
    %84 = vector.load %arg14[%c0_43, %c0_44] : memref<1x512xf32, #tpu.memory_space<vmem>>, vector<1x256xf32>
    %85 = vector.broadcast %84 : vector<1x256xf32> to vector<8x256xf32>
    %86 = arith.addf %83, %85 : vector<8x256xf32>
    %cst_45 = arith.constant 5.000000e-01 : f32
    %87 = vector.broadcast %cst_45 : f32 to vector<8x256xf32>
    %88 = arith.mulf %87, %86 : vector<8x256xf32>
    %cst_46 = arith.constant 0.707106769 : f32
    %89 = vector.broadcast %cst_46 : f32 to vector<8x256xf32>
    %90 = arith.mulf %86, %89 : vector<8x256xf32>
    %91 = math.erf %90 : vector<8x256xf32>
    %cst_47 = arith.constant 1.000000e+00 : f32
    %92 = vector.broadcast %cst_47 : f32 to vector<8x256xf32>
    %93 = arith.addf %92, %91 : vector<8x256xf32>
    %94 = arith.mulf %88, %93 : vector<8x256xf32>
    %c0_48 = arith.constant 0 : index
    %c0_49 = arith.constant 0 : index
    %95 = vector.load %arg15[%c0_48, %c0_49] : memref<512x128xf32, #tpu.memory_space<vmem>>, vector<256x128xf32>
    %cst_50 = arith.constant dense<0.000000e+00> : vector<8x128xf32>
    %96 = tpu.matmul %94, %95, %cst_50 {dimension_numbers = #tpu.dot_dimension_numbers<[1], [0], [0], [1], [0, 0, 1, 1], [], []>} : vector<8x256xf32>, vector<256x128xf32>, vector<8x128xf32> -> vector<8x128xf32>
    %97 = arith.addf %81, %96 : vector<8x128xf32>
    %c0_51 = arith.constant 0 : index
    %c256 = arith.constant 256 : index
    %98 = vector.load %arg13[%c0_51, %c256] : memref<128x512xf32, #tpu.memory_space<vmem>>, vector<128x256xf32>
    %cst_52 = arith.constant dense<0.000000e+00> : vector<8x256xf32>
    %99 = tpu.matmul %80, %98, %cst_52 {dimension_numbers = #tpu.dot_dimension_numbers<[1], [0], [0], [1], [0, 0, 1, 1], [], []>} : vector<8x128xf32>, vector<128x256xf32>, vector<8x256xf32> -> vector<8x256xf32>
    %c0_53 = arith.constant 0 : index
    %c256_54 = arith.constant 256 : index
    %100 = vector.load %arg14[%c0_53, %c256_54] : memref<1x512xf32, #tpu.memory_space<vmem>>, vector<1x256xf32>
    %101 = vector.broadcast %100 : vector<1x256xf32> to vector<8x256xf32>
    %102 = arith.addf %99, %101 : vector<8x256xf32>
    %cst_55 = arith.constant 5.000000e-01 : f32
    %103 = vector.broadcast %cst_55 : f32 to vector<8x256xf32>
    %104 = arith.mulf %103, %102 : vector<8x256xf32>
    %cst_56 = arith.constant 0.707106769 : f32
    %105 = vector.broadcast %cst_56 : f32 to vector<8x256xf32>
    %106 = arith.mulf %102, %105 : vector<8x256xf32>
    %107 = math.erf %106 : vector<8x256xf32>
    %cst_57 = arith.constant 1.000000e+00 : f32
    %108 = vector.broadcast %cst_57 : f32 to vector<8x256xf32>
    %109 = arith.addf %108, %107 : vector<8x256xf32>
    %110 = arith.mulf %104, %109 : vector<8x256xf32>
    %c256_58 = arith.constant 256 : index
    %c0_59 = arith.constant 0 : index
    %111 = vector.load %arg15[%c256_58, %c0_59] : memref<512x128xf32, #tpu.memory_space<vmem>>, vector<256x128xf32>
    %cst_60 = arith.constant dense<0.000000e+00> : vector<8x128xf32>
    %112 = tpu.matmul %110, %111, %cst_60 {dimension_numbers = #tpu.dot_dimension_numbers<[1], [0], [0], [1], [0, 0, 1, 1], [], []>} : vector<8x256xf32>, vector<256x128xf32>, vector<8x128xf32> -> vector<8x128xf32>
    %113 = arith.addf %97, %112 : vector<8x128xf32>
    %c0_61 = arith.constant 0 : index
    %c0_62 = arith.constant 0 : index
    %114 = vector.load %arg16[%c0_61, %c0_62] : memref<1x128xf32, #tpu.memory_space<vmem>>, vector<1x128xf32>
    %115 = vector.broadcast %114 : vector<1x128xf32> to vector<8x128xf32>
    %116 = arith.addf %113, %115 : vector<8x128xf32>
    %117 = arith.addf %6, %116 : vector<8x128xf32>
    %c0_63 = arith.constant 0 : index
    %c0_64 = arith.constant 0 : index
    %c0_65 = arith.constant 0 : index
    %118 = vector.load %arg17[%c0_63, %c0_64, %c0_65] : memref<1x8x256xf32, #tpu.memory_space<vmem>>, vector<1x8x128xf32>
    %119 = vector.shape_cast %118 : vector<1x8x128xf32> to vector<8x128xf32>
    %120 = vector.shape_cast %62 : vector<8x128xf32> to vector<1x8x128xf32>
    tpu.vector_store %arg17[%c0_63, %c0_64, %c0_65], %120 {strides = array<i32>} : memref<1x8x256xf32, #tpu.memory_space<vmem>>, vector<1x8x128xf32>,
    %c0_66 = arith.constant 0 : index
    %c0_67 = arith.constant 0 : index
    %c128_68 = arith.constant 128 : index
    %121 = vector.load %arg17[%c0_66, %c0_67, %c128_68] : memref<1x8x256xf32, #tpu.memory_space<vmem>>, vector<1x8x128xf32>
    %122 = vector.shape_cast %121 : vector<1x8x128xf32> to vector<8x128xf32>
    %123 = vector.shape_cast %117 : vector<8x128xf32> to vector<1x8x128xf32>
    tpu.vector_store %arg17[%c0_66, %c0_67, %c128_68], %123 {strides = array<i32>} : memref<1x8x256xf32, #tpu.memory_space<vmem>>, vector<1x8x128xf32>,
    return
  }
  func.func @transform_0(%arg0: i32, %arg1: i32) -> (i32, i32, i32) {
    %c0_i32 = arith.constant 0 : i32
    %c0_i32_0 = arith.constant 0 : i32
    return %arg0, %arg1, %c0_i32 : i32, i32, i32
  }
  func.func @transform_1(%arg0: i32, %arg1: i32) -> (i32, i32, i32) {
    %c0_i32 = arith.constant 0 : i32
    %c0_i32_0 = arith.constant 0 : i32
    %c0_i32_1 = arith.constant 0 : i32
    return %arg0, %c0_i32, %c0_i32_0 : i32, i32, i32
  }
  func.func @transform_2(%arg0: i32, %arg1: i32) -> (i32, i32, i32) {
    %c0_i32 = arith.constant 0 : i32
    %c0_i32_0 = arith.constant 0 : i32
    %c0_i32_1 = arith.constant 0 : i32
    return %arg0, %c0_i32, %c0_i32_0 : i32, i32, i32
  }
  func.func @transform_3(%arg0: i32, %arg1: i32) -> (i32, i32) {
    %c0_i32 = arith.constant 0 : i32
    %c0_i32_0 = arith.constant 0 : i32
    %c0_i32_1 = arith.constant 0 : i32
    return %c0_i32, %c0_i32_0 : i32, i32
  }
  func.func @transform_4(%arg0: i32, %arg1: i32) -> (i32, i32) {
    %c0_i32 = arith.constant 0 : i32
    %c0_i32_0 = arith.constant 0 : i32
    %c0_i32_1 = arith.constant 0 : i32
    return %c0_i32, %c0_i32_0 : i32, i32
  }
  func.func @transform_5(%arg0: i32, %arg1: i32) -> (i32, i32) {
    %c0_i32 = arith.constant 0 : i32
    %c0_i32_0 = arith.constant 0 : i32
    %c0_i32_1 = arith.constant 0 : i32
    return %c0_i32, %c0_i32_0 : i32, i32
  }
  func.func @transform_6(%arg0: i32, %arg1: i32) -> (i32, i32) {
    %c0_i32 = arith.constant 0 : i32
    %c0_i32_0 = arith.constant 0 : i32
    %c0_i32_1 = arith.constant 0 : i32
    return %c0_i32, %c0_i32_0 : i32, i32
  }
  func.func @transform_7(%arg0: i32, %arg1: i32) -> (i32, i32) {
    %c0_i32 = arith.constant 0 : i32
    %c0_i32_0 = arith.constant 0 : i32
    %c0_i32_1 = arith.constant 0 : i32
    return %c0_i32, %c0_i32_0 : i32, i32
  }
  func.func @transform_8(%arg0: i32, %arg1: i32) -> (i32, i32) {
    %c0_i32 = arith.constant 0 : i32
    %c0_i32_0 = arith.constant 0 : i32
    %c0_i32_1 = arith.constant 0 : i32
    return %c0_i32, %c0_i32_0 : i32, i32
  }
  func.func @transform_9(%arg0: i32, %arg1: i32) -> (i32, i32) {
    %c0_i32 = arith.constant 0 : i32
    %c0_i32_0 = arith.constant 0 : i32
    %c0_i32_1 = arith.constant 0 : i32
    return %c0_i32, %c0_i32_0 : i32, i32
  }
  func.func @transform_10(%arg0: i32, %arg1: i32) -> (i32, i32) {
    %c0_i32 = arith.constant 0 : i32
    %c0_i32_0 = arith.constant 0 : i32
    %c0_i32_1 = arith.constant 0 : i32
    return %c0_i32, %c0_i32_0 : i32, i32
  }
  func.func @transform_11(%arg0: i32, %arg1: i32) -> (i32, i32) {
    %c0_i32 = arith.constant 0 : i32
    %c0_i32_0 = arith.constant 0 : i32
    %c0_i32_1 = arith.constant 0 : i32
    return %c0_i32, %c0_i32_0 : i32, i32
  }
  func.func @transform_12(%arg0: i32, %arg1: i32) -> (i32, i32) {
    %c0_i32 = arith.constant 0 : i32
    %c0_i32_0 = arith.constant 0 : i32
    %c0_i32_1 = arith.constant 0 : i32
    return %c0_i32, %c0_i32_0 : i32, i32
  }
  func.func @transform_13(%arg0: i32, %arg1: i32) -> (i32, i32) {
    %c0_i32 = arith.constant 0 : i32
    %c0_i32_0 = arith.constant 0 : i32
    %c0_i32_1 = arith.constant 0 : i32
    return %c0_i32, %c0_i32_0 : i32, i32
  }
  func.func @transform_14(%arg0: i32, %arg1: i32) -> (i32, i32) {
    %c0_i32 = arith.constant 0 : i32
    %c0_i32_0 = arith.constant 0 : i32
    %c0_i32_1 = arith.constant 0 : i32
    return %c0_i32, %c0_i32_0 : i32, i32
  }
  func.func @transform_15(%arg0: i32, %arg1: i32) -> (i32, i32, i32) {
    %c0_i32 = arith.constant 0 : i32
    %c0_i32_0 = arith.constant 0 : i32
    return %arg0, %arg1, %c0_i32 : i32, i32, i32
  }
}

</mosaic_0001>

<llo_original>
// kernel: tpu_custom_call.1
$region0: #{tpu_custom_call.1}
  #allocation0 [shape = 'u32[]', space=smem, size = 0x4, offset = 0x4, fixed_abs, tag = 'smem constant byte address 0x4 - core index']
  #allocation1 [shape = 'u32[72,128]{1,0:T(1,128)}', space=vmem, size = 0x9000, scoped, tag = 'internal scratch']
  #allocation2 [shape = 'f32[4,16,32]{2,1,0:T(8,128)}', space=vmem, size = 0x8000, scoped, tag = 'scratch operand']
  #allocation3 [shape = 'f32[4,16,32]{2,1,0:T(8,128)}', space=vmem, size = 0x8000, scoped, tag = 'scratch operand']
  %s0 = inlined_call_operand.hbm [shape: f32[2,16,256], index: 0, kind: input, shape index: {}]
  %s1 = inlined_call_operand.hbm [shape: f32[2,16,256], index: 1, kind: input, shape index: {}]
  %s2 = inlined_call_operand.hbm [shape: f32[2,1,16], index: 2, kind: input, shape index: {}]
  %s3 = inlined_call_operand.hbm [shape: f32[128,128], index: 3, kind: input, shape index: {}]
  %s4 = inlined_call_operand.vmem [shape: f32[1,128], index: 4, kind: input, shape index: {}]
  %s5 = inlined_call_operand.hbm [shape: f32[128,128], index: 5, kind: input, shape index: {}]
  %s6 = inlined_call_operand.vmem [shape: f32[1,128], index: 6, kind: input, shape index: {}]
  %s7 = inlined_call_operand.hbm [shape: f32[128,128], index: 7, kind: input, shape index: {}]
  %s8 = inlined_call_operand.vmem [shape: f32[1,128], index: 8, kind: input, shape index: {}]
  %s9 = inlined_call_operand.hbm [shape: f32[128,128], index: 9, kind: input, shape index: {}]
  %s10 = inlined_call_operand.vmem [shape: f32[1,128], index: 10, kind: input, shape index: {}]
  %s11 = inlined_call_operand.hbm [shape: f32[128,512], index: 11, kind: input, shape index: {}]
  %s12 = inlined_call_operand.vmem [shape: f32[1,512], index: 12, kind: input, shape index: {}]
  %s13 = inlined_call_operand.hbm [shape: f32[512,128], index: 13, kind: input, shape index: {}]
  %s14 = inlined_call_operand.vmem [shape: f32[1,128], index: 14, kind: input, shape index: {}]
  %s15 = inlined_call_operand.hbm [shape: f32[2,16,256], index: 15, kind: output, shape index: {}]
  %s16 = sld [smem:[#allocation0]]
  $region133: #{tpu_custom_call.1} parent=0
    _
  %s18 = ssub.s32 1, %s16
  %s19 = scalar_select 0, %s18, %s16
  $region1: #{tpu_custom_call.1} parent=0
    #allocation4 [shape = 'u8[16384]{0}', space=vmem, size = 0x4000, scoped, tag = 'input window, operand 0']
    #allocation5 [shape = 's32[2]{0}', space=sflag, size = 0x8, scoped, tag = 'scoped memory for tpu_custom_call.1']
    #allocation6 [shape = 's32[2]{0}', space=sflag, size = 0x8, scoped, tag = 'scoped memory for tpu_custom_call.1']
    #allocation7 [shape = 'u8[32768]{0}', space=vmem, size = 0x8000, scoped, tag = 'input window, operand 1']
    #allocation8 [shape = 's32[2]{0}', space=sflag, size = 0x8, scoped, tag = 'scoped memory for tpu_custom_call.1']
    #allocation9 [shape = 'u8[1024]{0}', space=vmem, size = 0x400, scoped, tag = 'input window, operand 2']
    #allocation10 [shape = 'u8[65536]{0}', space=vmem, size = 0x10000, scoped, tag = 'input window, operand 3, single buffered']
    #allocation11 [shape = 's32[1]{0}', space=sflag, size = 0x4, scoped, tag = 'scoped memory for tpu_custom_call.1']
    #allocation12 [shape = 'u8[65536]{0}', space=vmem, size = 0x10000, scoped, tag = 'input window, operand 5, single buffered']
    #allocation13 [shape = 'u8[65536]{0}', space=vmem, size = 0x10000, scoped, tag = 'input window, operand 7, single buffered']
    #allocation14 [shape = 's32[1]{0}', space=sflag, size = 0x4, scoped, tag = 'scoped memory for tpu_custom_call.1']
    #allocation15 [shape = 'u8[65536]{0}', space=vmem, size = 0x10000, scoped, tag = 'input window, operand 9, single buffered']
    #allocation16 [shape = 'u8[262144]{0}', space=vmem, size = 0x40000, scoped, tag = 'input window, operand 11, single buffered']
    #allocation17 [shape = 's32[1]{0}', space=sflag, size = 0x4, scoped, tag = 'scoped memory for tpu_custom_call.1']
    #allocation18 [shape = 'u8[262144]{0}', space=vmem, size = 0x40000, scoped, tag = 'input window, operand 13, single buffered']
    #allocation19 [shape = 'u8[16384]{0}', space=vmem, size = 0x4000, scoped, tag = 'output window, operand 0']
    %20 = vsyncpa [#allocation5], 0
    %s21 = scalar_lea.sflag [#allocation5], 1
    %22 = vsyncpa %s21, 0
    %23 = vsyncpa [#allocation8], 0
    %s24 = scalar_lea.sflag [#allocation8], 1
    %25 = vsyncpa %s24, 0
    %26 = vsyncpa [#allocation11], 0
    %27 = vsyncpa [#allocation14], 0
    %28 = vsyncpa [#allocation17], 0
    %29 = vsyncpa [#allocation6], 0
    %s30 = scalar_lea.sflag [#allocation6], 1
    %31 = vsyncpa %s30, 0
    loop: start=0, step=1, limit=6
    $region2: #{tpu_custom_call.1} parent=1 // loop_pre_header
      _
    $region3: #{tpu_custom_call.1} parent=1 // loop_header
      %s33 = sphi 0, %s37
      %p34 = scmp.ge.s32.totalorder %s33, 6
      %s40 = sphi 0, %s52
      %s41 = sphi 0, %s48
      %s42 = sphi 0, %s40
      %s43 = sphi 0, %s41
      %s44 = sphi 0, %s42
      %s45 = sphi 0, %s43
      %s57 = sphi 0, %s59
      %s60 = sphi 0, %s57
      %s61 = sphi 0, %s60
      %s77 = sphi 0, %s61
      %s83 = sphi 0, %s85
      %s86 = sphi 0, %s83
      %s87 = sphi 0, %s86
      %s103 = sphi 0, %s87
      %s109 = sphi 0, %s111
      %s112 = sphi 0, %s109
      %s113 = sphi 0, %s112
      %s129 = sphi 0, %s113
      %s133 = sphi 0, %s133
      %s135 = sphi 0, %s133
      %s136 = sphi 0, %s135
      %s150 = sphi 0, %s136
      %s154 = sphi 0, %s154
      %s156 = sphi 0, %s154
      %s157 = sphi 0, %s156
      %s171 = sphi 0, %s157
      %s175 = sphi 0, %s175
      %s177 = sphi 0, %s175
      %s178 = sphi 0, %s177
      %s192 = sphi 0, %s178
      %s196 = sphi 0, %s196
      %s198 = sphi 0, %s196
      %s199 = sphi 0, %s198
      %s213 = sphi 0, %s199
      %s217 = sphi 0, %s217
      %s219 = sphi 0, %s217
      %s220 = sphi 0, %s219
      %s234 = sphi 0, %s220
      %s238 = sphi 0, %s238
      %s240 = sphi 0, %s238
      %s241 = sphi 0, %s240
      %s255 = sphi 0, %s241
      %s259 = sphi 0, %s259
      %s261 = sphi 0, %s259
      %s262 = sphi 0, %s261
      %s276 = sphi 0, %s262
      %s280 = sphi 0, %s280
      %s282 = sphi 0, %s280
      %s283 = sphi 0, %s282
      %s297 = sphi 0, %s283
      %s301 = sphi 0, %s301
      %s303 = sphi 0, %s301
      %s304 = sphi 0, %s303
      %s318 = sphi 0, %s304
      %s322 = sphi 0, %s322
      %s324 = sphi 0, %s322
      %s325 = sphi 0, %s324
      %s339 = sphi 0, %s325
      %s343 = sphi 0, %s343
      %s345 = sphi 0, %s343
      %s346 = sphi 0, %s345
      %s360 = sphi 0, %s346
      %s364 = sphi 0, %s364
      %s366 = sphi 0, %s364
      %s367 = sphi 0, %s366
      %s381 = sphi 0, %s367
      %s389 = sphi 0, %s391
      %s392 = sphi 0, %s389
      %s393 = sphi 0, %s392
      %s409 = sphi 0, %s393
    $region4: #{tpu_custom_call.1} parent=1 // loop_header_branch
      %36 = sbr.rel (%p34) target = $region8
    $region5: #{tpu_custom_call.1} parent=1 // loop_body
      %s38 = ssub.s32 %s33, 1
      %s39 = ssub.s32 %s33, 2
      %s46 = sadd.s32 1, %s41
      %p47 = scmp.ge.s32.totalorder %s46, 2
      %s48 = scalar_select %p47, 0, %s46
      %s49 = sadd.s32 1, %s40
      %s50 = scalar_select %p47, %s49, %s40
      %p51 = scmp.ge.s32.totalorder %s50, 2
      %s52 = scalar_select %p51, 0, %s50
      %s53 = ssub.s32 %s40, %s52
      %s54 = ssub.s32 %s41, %s48
      %s55 = sor.u32 %s53, %s54
      %p56 = scmp.eq.s32.totalorder %s55, 0
      %s58 = sadd.s32 %s57, 1
      %s59 = scalar_select %p56, %s57, %s58
      %p62 = pneg %p56
      %p63 = scmp.eq.s32.totalorder %s33, 3
      %p64 = por %p62, %p63
      %p65 = scmp.ne.s32.totalorder %s57, %s60
      %p66 = scmp.eq.s32.totalorder %s33, 0
      %p67 = por %p65, %p66
      %p68 = scmp.ne.s32.totalorder %s57, %s60
      %p69 = scmp.eq.s32.totalorder %s38, 3
      %p70 = por %p68, %p69
      %p71 = scmp.ne.s32.totalorder %s60, %s61
      %p72 = scmp.eq.s32.totalorder %s38, 0
      %p73 = por %p71, %p72
      %p74 = scmp.ne.s32.totalorder %s60, %s61
      %p75 = scmp.eq.s32.totalorder %s39, 3
      %p76 = por %p74, %p75
      %p78 = scmp.ne.s32.totalorder %s61, %s77
      %p79 = scmp.eq.s32.totalorder %s39, 0
      %p80 = por %p78, %p79
      %s81 = ssub.s32 %s40, %s52
      %p82 = scmp.eq.s32.totalorder %s81, 0
      %s84 = sadd.s32 %s83, 1
      %s85 = scalar_select %p82, %s83, %s84
      %p88 = pneg %p82
      %p89 = scmp.eq.s32.totalorder %s33, 3
      %p90 = por %p88, %p89
      %p91 = scmp.ne.s32.totalorder %s83, %s86
      %p92 = scmp.eq.s32.totalorder %s33, 0
      %p93 = por %p91, %p92
      %p94 = scmp.ne.s32.totalorder %s83, %s86
      %p95 = scmp.eq.s32.totalorder %s38, 3
      %p96 = por %p94, %p95
      %p97 = scmp.ne.s32.totalorder %s86, %s87
      %p98 = scmp.eq.s32.totalorder %s38, 0
      %p99 = por %p97, %p98
      %p100 = scmp.ne.s32.totalorder %s86, %s87
      %p101 = scmp.eq.s32.totalorder %s39, 3
      %p102 = por %p100, %p101
      %p104 = scmp.ne.s32.totalorder %s87, %s103
      %p105 = scmp.eq.s32.totalorder %s39, 0
      %p106 = por %p104, %p105
      %s107 = ssub.s32 %s40, %s52
      %p108 = scmp.eq.s32.totalorder %s107, 0
      %s110 = sadd.s32 %s109, 1
      %s111 = scalar_select %p108, %s109, %s110
      %p114 = pneg %p108
      %p115 = scmp.eq.s32.totalorder %s33, 3
      %p116 = por %p114, %p115
      %p117 = scmp.ne.s32.totalorder %s109, %s112
      %p118 = scmp.eq.s32.totalorder %s33, 0
      %p119 = por %p117, %p118
      %p120 = scmp.ne.s32.totalorder %s109, %s112
      %p121 = scmp.eq.s32.totalorder %s38, 3
      %p122 = por %p120, %p121
      %p123 = scmp.ne.s32.totalorder %s112, %s113
      %p124 = scmp.eq.s32.totalorder %s38, 0
      %p125 = por %p123, %p124
      %p126 = scmp.ne.s32.totalorder %s112, %s113
      %p127 = scmp.eq.s32.totalorder %s39, 3
      %p128 = por %p126, %p127
      %p130 = scmp.ne.s32.totalorder %s113, %s129
      %p131 = scmp.eq.s32.totalorder %s39, 0
      %p132 = por %p130, %p131
      %s134 = sadd.s32 %s133, 1
      %p137 = scmp.eq.s32.totalorder %s33, 3
      %p138 = scmp.ne.s32.totalorder %s133, %s135
      %p139 = scmp.eq.s32.totalorder %s33, 0
      %p140 = por %p138, %p139
      %p141 = scmp.ne.s32.totalorder %s133, %s135
      %p142 = scmp.eq.s32.totalorder %s38, 3
      %p143 = por %p141, %p142
      %p144 = scmp.ne.s32.totalorder %s135, %s136
      %p145 = scmp.eq.s32.totalorder %s38, 0
      %p146 = por %p144, %p145
      %p147 = scmp.ne.s32.totalorder %s135, %s136
      %p148 = scmp.eq.s32.totalorder %s39, 3
      %p149 = por %p147, %p148
      %p151 = scmp.ne.s32.totalorder %s136, %s150
      %p152 = scmp.eq.s32.totalorder %s39, 0
      %p153 = por %p151, %p152
      %s155 = sadd.s32 %s154, 1
      %p158 = scmp.eq.s32.totalorder %s33, 3
      %p159 = scmp.ne.s32.totalorder %s154, %s156
      %p160 = scmp.eq.s32.totalorder %s33, 0
      %p161 = por %p159, %p160
      %p162 = scmp.ne.s32.totalorder %s154, %s156
      %p163 = scmp.eq.s32.totalorder %s38, 3
      %p164 = por %p162, %p163
      %p165 = scmp.ne.s32.totalorder %s156, %s157
      %p166 = scmp.eq.s32.totalorder %s38, 0
      %p167 = por %p165, %p166
      %p168 = scmp.ne.s32.totalorder %s156, %s157
      %p169 = scmp.eq.s32.totalorder %s39, 3
      %p170 = por %p168, %p169
      %p172 = scmp.ne.s32.totalorder %s157, %s171
      %p173 = scmp.eq.s32.totalorder %s39, 0
      %p174 = por %p172, %p173
      %s176 = sadd.s32 %s175, 1
      %p179 = scmp.eq.s32.totalorder %s33, 3
      %p180 = scmp.ne.s32.totalorder %s175, %s177
      %p181 = scmp.eq.s32.totalorder %s33, 0
      %p182 = por %p180, %p181
      %p183 = scmp.ne.s32.totalorder %s175, %s177
      %p184 = scmp.eq.s32.totalorder %s38, 3
      %p185 = por %p183, %p184
      %p186 = scmp.ne.s32.totalorder %s177, %s178
      %p187 = scmp.eq.s32.totalorder %s38, 0
      %p188 = por %p186, %p187
      %p189 = scmp.ne.s32.totalorder %s177, %s178
      %p190 = scmp.eq.s32.totalorder %s39, 3
      %p191 = por %p189, %p190
      %p193 = scmp.ne.s32.totalorder %s178, %s192
      %p194 = scmp.eq.s32.totalorder %s39, 0
      %p195 = por %p193, %p194
      %s197 = sadd.s32 %s196, 1
      %p200 = scmp.eq.s32.totalorder %s33, 3
      %p201 = scmp.ne.s32.totalorder %s196, %s198
      %p202 = scmp.eq.s32.totalorder %s33, 0
      %p203 = por %p201, %p202
      %p204 = scmp.ne.s32.totalorder %s196, %s198
      %p205 = scmp.eq.s32.totalorder %s38, 3
      %p206 = por %p204, %p205
      %p207 = scmp.ne.s32.totalorder %s198, %s199
      %p208 = scmp.eq.s32.totalorder %s38, 0
      %p209 = por %p207, %p208
      %p210 = scmp.ne.s32.totalorder %s198, %s199
      %p211 = scmp.eq.s32.totalorder %s39, 3
      %p212 = por %p210, %p211
      %p214 = scmp.ne.s32.totalorder %s199, %s213
      %p215 = scmp.eq.s32.totalorder %s39, 0
      %p216 = por %p214, %p215
      %s218 = sadd.s32 %s217, 1
      %p221 = scmp.eq.s32.totalorder %s33, 3
      %p222 = scmp.ne.s32.totalorder %s217, %s219
      %p223 = scmp.eq.s32.totalorder %s33, 0
      %p224 = por %p222, %p223
      %p225 = scmp.ne.s32.totalorder %s217, %s219
      %p226 = scmp.eq.s32.totalorder %s38, 3
      %p227 = por %p225, %p226
      %p228 = scmp.ne.s32.totalorder %s219, %s220
      %p229 = scmp.eq.s32.totalorder %s38, 0
      %p230 = por %p228, %p229
      %p231 = scmp.ne.s32.totalorder %s219, %s220
      %p232 = scmp.eq.s32.totalorder %s39, 3
      %p233 = por %p231, %p232
      %p235 = scmp.ne.s32.totalorder %s220, %s234
      %p236 = scmp.eq.s32.totalorder %s39, 0
      %p237 = por %p235, %p236
      %s239 = sadd.s32 %s238, 1
      %p242 = scmp.eq.s32.totalorder %s33, 3
      %p243 = scmp.ne.s32.totalorder %s238, %s240
      %p244 = scmp.eq.s32.totalorder %s33, 0
      %p245 = por %p243, %p244
      %p246 = scmp.ne.s32.totalorder %s238, %s240
      %p247 = scmp.eq.s32.totalorder %s38, 3
      %p248 = por %p246, %p247
      %p249 = scmp.ne.s32.totalorder %s240, %s241
      %p250 = scmp.eq.s32.totalorder %s38, 0
      %p251 = por %p249, %p250
      %p252 = scmp.ne.s32.totalorder %s240, %s241
      %p253 = scmp.eq.s32.totalorder %s39, 3
      %p254 = por %p252, %p253
      %p256 = scmp.ne.s32.totalorder %s241, %s255
      %p257 = scmp.eq.s32.totalorder %s39, 0
      %p258 = por %p256, %p257
      %s260 = sadd.s32 %s259, 1
      %p263 = scmp.eq.s32.totalorder %s33, 3
      %p264 = scmp.ne.s32.totalorder %s259, %s261
      %p265 = scmp.eq.s32.totalorder %s33, 0
      %p266 = por %p264, %p265
      %p267 = scmp.ne.s32.totalorder %s259, %s261
      %p268 = scmp.eq.s32.totalorder %s38, 3
      %p269 = por %p267, %p268
      %p270 = scmp.ne.s32.totalorder %s261, %s262
      %p271 = scmp.eq.s32.totalorder %s38, 0
      %p272 = por %p270, %p271
      %p273 = scmp.ne.s32.totalorder %s261, %s262
      %p274 = scmp.eq.s32.totalorder %s39, 3
      %p275 = por %p273, %p274
      %p277 = scmp.ne.s32.totalorder %s262, %s276
      %p278 = scmp.eq.s32.totalorder %s39, 0
      %p279 = por %p277, %p278
      %s281 = sadd.s32 %s280, 1
      %p284 = scmp.eq.s32.totalorder %s33, 3
      %p285 = scmp.ne.s32.totalorder %s280, %s282
      %p286 = scmp.eq.s32.totalorder %s33, 0
      %p287 = por %p285, %p286
      %p288 = scmp.ne.s32.totalorder %s280, %s282
      %p289 = scmp.eq.s32.totalorder %s38, 3
      %p290 = por %p288, %p289
      %p291 = scmp.ne.s32.totalorder %s282, %s283
      %p292 = scmp.eq.s32.totalorder %s38, 0
      %p293 = por %p291, %p292
      %p294 = scmp.ne.s32.totalorder %s282, %s283
      %p295 = scmp.eq.s32.totalorder %s39, 3
      %p296 = por %p294, %p295
      %p298 = scmp.ne.s32.totalorder %s283, %s297
      %p299 = scmp.eq.s32.totalorder %s39, 0
      %p300 = por %p298, %p299
      %s302 = sadd.s32 %s301, 1
      %p305 = scmp.eq.s32.totalorder %s33, 3
      %p306 = scmp.ne.s32.totalorder %s301, %s303
      %p307 = scmp.eq.s32.totalorder %s33, 0
      %p308 = por %p306, %p307
      %p309 = scmp.ne.s32.totalorder %s301, %s303
      %p310 = scmp.eq.s32.totalorder %s38, 3
      %p311 = por %p309, %p310
      %p312 = scmp.ne.s32.totalorder %s303, %s304
      %p313 = scmp.eq.s32.totalorder %s38, 0
      %p314 = por %p312, %p313
      %p315 = scmp.ne.s32.totalorder %s303, %s304
      %p316 = scmp.eq.s32.totalorder %s39, 3
      %p317 = por %p315, %p316
      %p319 = scmp.ne.s32.totalorder %s304, %s318
      %p320 = scmp.eq.s32.totalorder %s39, 0
      %p321 = por %p319, %p320
      %s323 = sadd.s32 %s322, 1
      %p326 = scmp.eq.s32.totalorder %s33, 3
      %p327 = scmp.ne.s32.totalorder %s322, %s324
      %p328 = scmp.eq.s32.totalorder %s33, 0
      %p329 = por %p327, %p328
      %p330 = scmp.ne.s32.totalorder %s322, %s324
      %p331 = scmp.eq.s32.totalorder %s38, 3
      %p332 = por %p330, %p331
      %p333 = scmp.ne.s32.totalorder %s324, %s325
      %p334 = scmp.eq.s32.totalorder %s38, 0
      %p335 = por %p333, %p334
      %p336 = scmp.ne.s32.totalorder %s324, %s325
      %p337 = scmp.eq.s32.totalorder %s39, 3
      %p338 = por %p336, %p337
      %p340 = scmp.ne.s32.totalorder %s325, %s339
      %p341 = scmp.eq.s32.totalorder %s39, 0
      %p342 = por %p340, %p341
      %s344 = sadd.s32 %s343, 1
      %p347 = scmp.eq.s32.totalorder %s33, 3
      %p348 = scmp.ne.s32.totalorder %s343, %s345
      %p349 = scmp.eq.s32.totalorder %s33, 0
      %p350 = por %p348, %p349
      %p351 = scmp.ne.s32.totalorder %s343, %s345
      %p352 = scmp.eq.s32.totalorder %s38, 3
      %p353 = por %p351, %p352
      %p354 = scmp.ne.s32.totalorder %s345, %s346
      %p355 = scmp.eq.s32.totalorder %s38, 0
      %p356 = por %p354, %p355
      %p357 = scmp.ne.s32.totalorder %s345, %s346
      %p358 = scmp.eq.s32.totalorder %s39, 3
      %p359 = por %p357, %p358
      %p361 = scmp.ne.s32.totalorder %s346, %s360
      %p362 = scmp.eq.s32.totalorder %s39, 0
      %p363 = por %p361, %p362
      %s365 = sadd.s32 %s364, 1
      %p368 = scmp.eq.s32.totalorder %s33, 3
      %p369 = scmp.ne.s32.totalorder %s364, %s366
      %p370 = scmp.eq.s32.totalorder %s33, 0
      %p371 = por %p369, %p370
      %p372 = scmp.ne.s32.totalorder %s364, %s366
      %p373 = scmp.eq.s32.totalorder %s38, 3
      %p374 = por %p372, %p373
      %p375 = scmp.ne.s32.totalorder %s366, %s367
      %p376 = scmp.eq.s32.totalorder %s38, 0
      %p377 = por %p375, %p376
      %p378 = scmp.ne.s32.totalorder %s366, %s367
      %p379 = scmp.eq.s32.totalorder %s39, 3
      %p380 = por %p378, %p379
      %p382 = scmp.ne.s32.totalorder %s367, %s381
      %p383 = scmp.eq.s32.totalorder %s39, 0
      %p384 = por %p382, %p383
      %s385 = ssub.s32 %s40, %s52
      %s386 = ssub.s32 %s41, %s48
      %s387 = sor.u32 %s385, %s386
      %p388 = scmp.eq.s32.totalorder %s387, 0
      %s390 = sadd.s32 %s389, 1
      %s391 = scalar_select %p388, %s389, %s390
      %p394 = pneg %p388
      %p395 = scmp.eq.s32.totalorder %s33, 3
      %p396 = por %p394, %p395
      %p397 = scmp.ne.s32.totalorder %s389, %s392
      %p398 = scmp.eq.s32.totalorder %s33, 0
      %p399 = por %p397, %p398
      %p400 = scmp.ne.s32.totalorder %s389, %s392
      %p401 = scmp.eq.s32.totalorder %s38, 3
      %p402 = por %p400, %p401
      %p403 = scmp.ne.s32.totalorder %s392, %s393
      %p404 = scmp.eq.s32.totalorder %s38, 0
      %p405 = por %p403, %p404
      %p406 = scmp.ne.s32.totalorder %s392, %s393
      %p407 = scmp.eq.s32.totalorder %s39, 3
      %p408 = por %p406, %p407
      %p410 = scmp.ne.s32.totalorder %s393, %s409
      %p411 = scmp.eq.s32.totalorder %s39, 0
      %p412 = por %p410, %p411
      %p413 = scmp.le.s32.totalorder 1, %s33
      %p414 = scmp.lt.s32.totalorder %s33, 5
      %p415 = pnand %p413, %p414
      %p416 = pneg %p415
      // Predicated region
      $region9: #{tpu_custom_call.1} parent=5 // pred_check
        _
      $region10: #{tpu_custom_call.1} parent=5 // pred_check_branch
        %418 = sbr.rel (%p415) target = $region12
      $region11: #{tpu_custom_call.1} parent=5 // pred_region
        %s419 = ssub.s32 %s33, 1
        // Predicated region
        $region13: #{tpu_custom_call.1} parent=11 // pred_check
          %p420 = pneg %p146
        $region14: #{tpu_custom_call.1} parent=11 // pred_check_branch
          %422 = sbr.rel (%p420) target = $region16
        $region15: #{tpu_custom_call.1} parent=11 // pred_region
          %424 = vsyncadd [#allocation11], 0
          %s425 = sshll.u32 %s3, 4
          %s426 = int_to_ptr.hbm [resolvable:$true] %s425
          %s427 = sshll.u32 [#allocation10], 4
          %s428 = int_to_ptr.vmem [resolvable:$true] %s427
          %433 = dma.hbm_to_vmem [thread:$0]  %s426, 2048, %s428, [#allocation11], 128, 128, 8
        $region16: #{tpu_custom_call.1} parent=11 // pred_fallthru
          _
        // Predicated region
        $region17: #{tpu_custom_call.1} parent=11 // pred_check
          %p434 = pneg %p167
        $region18: #{tpu_custom_call.1} parent=11 // pred_check_branch
          %436 = sbr.rel (%p434) target = $region20
        $region19: #{tpu_custom_call.1} parent=11 // pred_region
          _
        $region20: #{tpu_custom_call.1} parent=11 // pred_fallthru
          _
        // Predicated region
        $region21: #{tpu_custom_call.1} parent=11 // pred_check
          %p437 = pneg %p188
        $region22: #{tpu_custom_call.1} parent=11 // pred_check_branch
          %439 = sbr.rel (%p437) target = $region24
        $region23: #{tpu_custom_call.1} parent=11 // pred_region
          %441 = vsyncadd [#allocation11], 0
          %s442 = sshll.u32 %s5, 4
          %s443 = int_to_ptr.hbm [resolvable:$true] %s442
          %s444 = sshll.u32 [#allocation12], 4
          %s445 = int_to_ptr.vmem [resolvable:$true] %s444
          %450 = dma.hbm_to_vmem [thread:$0]  %s443, 2048, %s445, [#allocation11], 128, 128, 8
        $region24: #{tpu_custom_call.1} parent=11 // pred_fallthru
          _
        // Predicated region
        $region25: #{tpu_custom_call.1} parent=11 // pred_check
          %p451 = pneg %p209
        $region26: #{tpu_custom_call.1} parent=11 // pred_check_branch
          %453 = sbr.rel (%p451) target = $region28
        $region27: #{tpu_custom_call.1} parent=11 // pred_region
          _
        $region28: #{tpu_custom_call.1} parent=11 // pred_fallthru
          _
        // Predicated region
        $region29: #{tpu_custom_call.1} parent=11 // pred_check
          %p454 = pneg %p230
        $region30: #{tpu_custom_call.1} parent=11 // pred_check_branch
          %456 = sbr.rel (%p454) target = $region32
        $region31: #{tpu_custom_call.1} parent=11 // pred_region
          %458 = vsyncadd [#allocation14], 0
          %s459 = sshll.u32 %s7, 4
          %s460 = int_to_ptr.hbm [resolvable:$true] %s459
          %s461 = sshll.u32 [#allocation13], 4
          %s462 = int_to_ptr.vmem [resolvable:$true] %s461
          %467 = dma.hbm_to_vmem [thread:$0]  %s460, 2048, %s462, [#allocation14], 128, 128, 8
        $region32: #{tpu_custom_call.1} parent=11 // pred_fallthru
          _
        // Predicated region
        $region33: #{tpu_custom_call.1} parent=11 // pred_check
          %p468 = pneg %p251
        $region34: #{tpu_custom_call.1} parent=11 // pred_check_branch
          %470 = sbr.rel (%p468) target = $region36
        $region35: #{tpu_custom_call.1} parent=11 // pred_region
          _
        $region36: #{tpu_custom_call.1} parent=11 // pred_fallthru
          _
        // Predicated region
        $region37: #{tpu_custom_call.1} parent=11 // pred_check
          %p471 = pneg %p272
        $region38: #{tpu_custom_call.1} parent=11 // pred_check_branch
          %473 = sbr.rel (%p471) target = $region40
        $region39: #{tpu_custom_call.1} parent=11 // pred_region
          %475 = vsyncadd [#allocation14], 0
          %s476 = sshll.u32 %s9, 4
          %s477 = int_to_ptr.hbm [resolvable:$true] %s476
          %s478 = sshll.u32 [#allocation15], 4
          %s479 = int_to_ptr.vmem [resolvable:$true] %s478
          %484 = dma.hbm_to_vmem [thread:$0]  %s477, 2048, %s479, [#allocation14], 128, 128, 8
        $region40: #{tpu_custom_call.1} parent=11 // pred_fallthru
          _
        // Predicated region
        $region41: #{tpu_custom_call.1} parent=11 // pred_check
          %p485 = pneg %p293
        $region42: #{tpu_custom_call.1} parent=11 // pred_check_branch
          %487 = sbr.rel (%p485) target = $region44
        $region43: #{tpu_custom_call.1} parent=11 // pred_region
          _
        $region44: #{tpu_custom_call.1} parent=11 // pred_fallthru
          _
        // Predicated region
        $region45: #{tpu_custom_call.1} parent=11 // pred_check
          %p488 = pneg %p314
        $region46: #{tpu_custom_call.1} parent=11 // pred_check_branch
          %490 = sbr.rel (%p488) target = $region48
        $region47: #{tpu_custom_call.1} parent=11 // pred_region
          %492 = vsyncadd [#allocation17], 0
          %s493 = sshll.u32 %s11, 4
          %s494 = int_to_ptr.hbm [resolvable:$true] %s493
          %s495 = sshll.u32 [#allocation16], 4
          %s496 = int_to_ptr.vmem [resolvable:$true] %s495
          %501 = dma.hbm_to_vmem [thread:$0]  %s494, 8192, %s496, [#allocation17], 512, 512, 32
        $region48: #{tpu_custom_call.1} parent=11 // pred_fallthru
          _
        // Predicated region
        $region49: #{tpu_custom_call.1} parent=11 // pred_check
          %p502 = pneg %p335
        $region50: #{tpu_custom_call.1} parent=11 // pred_check_branch
          %504 = sbr.rel (%p502) target = $region52
        $region51: #{tpu_custom_call.1} parent=11 // pred_region
          _
        $region52: #{tpu_custom_call.1} parent=11 // pred_fallthru
          _
        // Predicated region
        $region53: #{tpu_custom_call.1} parent=11 // pred_check
          %p505 = pneg %p356
        $region54: #{tpu_custom_call.1} parent=11 // pred_check_branch
          %507 = sbr.rel (%p505) target = $region56
        $region55: #{tpu_custom_call.1} parent=11 // pred_region
          %509 = vsyncadd [#allocation17], 0
          %s510 = sshll.u32 %s13, 4
          %s511 = int_to_ptr.hbm [resolvable:$true] %s510
          %s512 = sshll.u32 [#allocation18], 4
          %s513 = int_to_ptr.vmem [resolvable:$true] %s512
          %518 = dma.hbm_to_vmem [thread:$0]  %s511, 8192, %s513, [#allocation17], 128, 128, 8
        $region56: #{tpu_custom_call.1} parent=11 // pred_fallthru
          _
        // Predicated region
        $region57: #{tpu_custom_call.1} parent=11 // pred_check
          %p519 = pneg %p377
        $region58: #{tpu_custom_call.1} parent=11 // pred_check_branch
          %521 = sbr.rel (%p519) target = $region60
        $region59: #{tpu_custom_call.1} parent=11 // pred_region
          _
        $region60: #{tpu_custom_call.1} parent=11 // pred_fallthru
          _
      $region12: #{tpu_custom_call.1} parent=5 // pred_fallthru
        _
      %p522 = scmp.lt.s32.totalorder %s33, 4
      // Predicated region
      $region61: #{tpu_custom_call.1} parent=5 // pred_check
        %p523 = pneg %p522
      $region62: #{tpu_custom_call.1} parent=5 // pred_check_branch
        %525 = sbr.rel (%p523) target = $region64
      $region63: #{tpu_custom_call.1} parent=5 // pred_region
        // Predicated region
        $region65: #{tpu_custom_call.1} parent=63 // pred_check
          %p526 = pneg %p67
        $region66: #{tpu_custom_call.1} parent=63 // pred_check_branch
          %528 = sbr.rel (%p526) target = $region68
        $region67: #{tpu_custom_call.1} parent=63 // pred_region
          %s529 = sand.u32 %s57, 1
          %s530 = scalar_lea.sflag [#allocation5], %s529
          %s531 = sand.u32 %s57, 1
          %s532 = smul.addr %s531, 16
          %s533 = scalar_lea.vmem [#allocation4], %s532
          %535 = vsyncadd %s530, 0
          %s536 = smul.addr %s41, 2
          %s537 = smul.addr %s40, 4
          %s538 = sadd.s32 %s536, %s537
          %s539 = smul.addr %s538, 8
          %s540 = scalar_lea.hbm %s0, %s539
          %s542 = sshll.u32 %s540, 4
          %s543 = int_to_ptr.hbm [resolvable:$true] %s542
          %s544 = sshll.u32 %s533, 4
          %s545 = int_to_ptr.vmem [resolvable:$true] %s544
          %547 = dma.hbm_to_vmem [thread:$0]  %s543, 256, %s545, %s530
        $region68: #{tpu_custom_call.1} parent=63 // pred_fallthru
          _
        // Predicated region
        $region69: #{tpu_custom_call.1} parent=63 // pred_check
          %p548 = pneg %p93
        $region70: #{tpu_custom_call.1} parent=63 // pred_check_branch
          %550 = sbr.rel (%p548) target = $region72
        $region71: #{tpu_custom_call.1} parent=63 // pred_region
          %s551 = sand.u32 %s33, 1
          %s552 = scalar_lea.sflag [#allocation8], %s551
          %s553 = sand.u32 %s83, 1
          %s554 = smul.addr %s553, 32
          %s555 = scalar_lea.vmem [#allocation7], %s554
          %557 = vsyncadd %s552, 0
          %s558 = smul.addr %s40, 4
          %s559 = smul.addr %s558, 8
          %s560 = scalar_lea.hbm %s1, %s559
          %s561 = sshll.u32 %s560, 4
          %s562 = int_to_ptr.hbm [resolvable:$true] %s561
          %s563 = sshll.u32 %s555, 4
          %s564 = int_to_ptr.vmem [resolvable:$true] %s563
          %569 = dma.hbm_to_vmem [thread:$0]  %s562, 512, %s564, %s552, 256, 256, 16
        $region72: #{tpu_custom_call.1} parent=63 // pred_fallthru
          _
        // Predicated region
        $region73: #{tpu_custom_call.1} parent=63 // pred_check
          %p570 = pneg %p119
        $region74: #{tpu_custom_call.1} parent=63 // pred_check_branch
          %572 = sbr.rel (%p570) target = $region76
        $region75: #{tpu_custom_call.1} parent=63 // pred_region
          %s573 = sand.u32 %s33, 1
          %s574 = scalar_lea.sflag [#allocation8], %s573
          %s575 = sand.u32 %s109, 1
          %s576 = scalar_lea.vmem [#allocation9], %s575
          %578 = vsyncadd %s574, 0
          %s579 = scalar_lea.hbm %s2, %s40
          %s581 = sshll.u32 %s579, 4
          %s582 = int_to_ptr.hbm [resolvable:$true] %s581
          %s583 = sshll.u32 %s576, 4
          %s584 = int_to_ptr.vmem [resolvable:$true] %s583
          %586 = dma.hbm_to_vmem [thread:$0]  %s582, 16, %s584, %s574
        $region76: #{tpu_custom_call.1} parent=63 // pred_fallthru
          _
      $region64: #{tpu_custom_call.1} parent=5 // pred_fallthru
        _
      %p587 = scmp.le.s32.totalorder 1, %s33
      %p588 = scmp.lt.s32.totalorder %s33, 5
      %p589 = pnand %p587, %p588
      %p590 = pneg %p589
      // Predicated region
      $region77: #{tpu_custom_call.1} parent=5 // pred_check
        _
      $region78: #{tpu_custom_call.1} parent=5 // pred_check_branch
        %592 = sbr.rel (%p589) target = $region80
      $region79: #{tpu_custom_call.1} parent=5 // pred_region
        %s593 = ssub.s32 %s33, 1
        %s594 = sand.u32 %s60, 1
        %s595 = scalar_lea.sflag [#allocation5], %s594
        %s596 = sand.u32 %s60, 1
        %s597 = smul.addr %s596, 16
        %s598 = scalar_lea.vmem [#allocation4], %s597
        // Predicated region
        $region81: #{tpu_custom_call.1} parent=79 // pred_check
          %p599 = pneg %p73
        $region82: #{tpu_custom_call.1} parent=79 // pred_check_branch
          %601 = sbr.rel (%p599) target = $region84
        $region83: #{tpu_custom_call.1} parent=79 // pred_region
          %603 = dma.done %s595, 256
        $region84: #{tpu_custom_call.1} parent=79 // pred_fallthru
          _
        %s604 = sand.u32 %s38, 1
        %s605 = scalar_lea.sflag [#allocation8], %s604
        %s606 = sand.u32 %s86, 1
        %s607 = smul.addr %s606, 32
        %s608 = scalar_lea.vmem [#allocation7], %s607
        // Predicated region
        $region85: #{tpu_custom_call.1} parent=79 // pred_check
          %p609 = pneg %p99
        $region86: #{tpu_custom_call.1} parent=79 // pred_check_branch
          %611 = sbr.rel (%p609) target = $region88
        $region87: #{tpu_custom_call.1} parent=79 // pred_region
          %613 = dma.done %s605, 512
        $region88: #{tpu_custom_call.1} parent=79 // pred_fallthru
          _
        %s614 = sand.u32 %s38, 1
        %s615 = scalar_lea.sflag [#allocation8], %s614
        %s616 = sand.u32 %s112, 1
        %s617 = scalar_lea.vmem [#allocation9], %s616
        // Predicated region
        $region89: #{tpu_custom_call.1} parent=79 // pred_check
          %p618 = pneg %p125
        $region90: #{tpu_custom_call.1} parent=79 // pred_check_branch
          %620 = sbr.rel (%p618) target = $region92
        $region91: #{tpu_custom_call.1} parent=79 // pred_region
          %622 = dma.done %s615, 16
        $region92: #{tpu_custom_call.1} parent=79 // pred_fallthru
          _
        // Predicated region
        $region93: #{tpu_custom_call.1} parent=79 // pred_check
          %p623 = pneg %p146
        $region94: #{tpu_custom_call.1} parent=79 // pred_check_branch
          %625 = sbr.rel (%p623) target = $region96
        $region95: #{tpu_custom_call.1} parent=79 // pred_region
          %627 = dma.done [#allocation11], 2048
        $region96: #{tpu_custom_call.1} parent=79 // pred_fallthru
          _
        // Predicated region
        $region97: #{tpu_custom_call.1} parent=79 // pred_check
          %p628 = pneg %p188
        $region98: #{tpu_custom_call.1} parent=79 // pred_check_branch
          %630 = sbr.rel (%p628) target = $region100
        $region99: #{tpu_custom_call.1} parent=79 // pred_region
          %632 = dma.done [#allocation11], 2048
        $region100: #{tpu_custom_call.1} parent=79 // pred_fallthru
          _
        // Predicated region
        $region101: #{tpu_custom_call.1} parent=79 // pred_check
          %p633 = pneg %p230
        $region102: #{tpu_custom_call.1} parent=79 // pred_check_branch
          %635 = sbr.rel (%p633) target = $region104
        $region103: #{tpu_custom_call.1} parent=79 // pred_region
          %637 = dma.done [#allocation14], 2048
        $region104: #{tpu_custom_call.1} parent=79 // pred_fallthru
          _
        // Predicated region
        $region105: #{tpu_custom_call.1} parent=79 // pred_check
          %p638 = pneg %p272
        $region106: #{tpu_custom_call.1} parent=79 // pred_check_branch
          %640 = sbr.rel (%p638) target = $region108
        $region107: #{tpu_custom_call.1} parent=79 // pred_region
          %642 = dma.done [#allocation14], 2048
        $region108: #{tpu_custom_call.1} parent=79 // pred_fallthru
          _
        // Predicated region
        $region109: #{tpu_custom_call.1} parent=79 // pred_check
          %p643 = pneg %p314
        $region110: #{tpu_custom_call.1} parent=79 // pred_check_branch
          %645 = sbr.rel (%p643) target = $region112
        $region111: #{tpu_custom_call.1} parent=79 // pred_region
          %647 = dma.done [#allocation17], 8192
        $region112: #{tpu_custom_call.1} parent=79 // pred_fallthru
          _
        // Predicated region
        $region113: #{tpu_custom_call.1} parent=79 // pred_check
          %p648 = pneg %p356
        $region114: #{tpu_custom_call.1} parent=79 // pred_check_branch
          %650 = sbr.rel (%p648) target = $region116
        $region115: #{tpu_custom_call.1} parent=79 // pred_region
          %652 = dma.done [#allocation17], 8192
        $region116: #{tpu_custom_call.1} parent=79 // pred_fallthru
          _
        %s653 = sand.u32 %s60, 1
        %s654 = scalar_lea.sflag [#allocation5], %s653
        %s655 = sand.u32 %s60, 1
        %s656 = smul.addr %s655, 16
        %s657 = scalar_lea.vmem [#allocation4], %s656
        %p658 = pneg %p73
        %p659 = pneg %p70
        %s660 = sand.u32 %s38, 1
        %s661 = scalar_lea.sflag [#allocation8], %s660
        %s662 = sand.u32 %s86, 1
        %s663 = smul.addr %s662, 32
        %s664 = scalar_lea.vmem [#allocation7], %s663
        %p665 = pneg %p99
        %p666 = pneg %p96
        %s667 = sand.u32 %s38, 1
        %s668 = scalar_lea.sflag [#allocation8], %s667
        %s669 = sand.u32 %s112, 1
        %s670 = scalar_lea.vmem [#allocation9], %s669
        %p671 = pneg %p125
        %p672 = pneg %p122
        %p673 = pneg %p146
        %p674 = pneg %p143
        %p675 = pneg %p167
        %p676 = pneg %p164
        %p677 = pneg %p188
        %p678 = pneg %p185
        %p679 = pneg %p209
        %p680 = pneg %p206
        %p681 = pneg %p230
        %p682 = pneg %p227
        %p683 = pneg %p251
        %p684 = pneg %p248
        %p685 = pneg %p272
        %p686 = pneg %p269
        %p687 = pneg %p293
        %p688 = pneg %p290
        %p689 = pneg %p314
        %p690 = pneg %p311
        %p691 = pneg %p335
        %p692 = pneg %p332
        %p693 = pneg %p356
        %p694 = pneg %p353
        %p695 = pneg %p377
        %p696 = pneg %p374
        %p697 = pneg %p405
        %p698 = pneg %p402
        %s699 = sand.u32 %s392, 1
        %s700 = scalar_lea.sflag [#allocation6], %s699
        %s701 = sand.u32 %s392, 1
        %s702 = smul.addr %s701, 16
        %s703 = scalar_lea.vmem [#allocation19], %s702
        %p704 = scmp.eq.s32.totalorder %s43, 0
        // Predicated region
        $region117: #{tpu_custom_call.1} parent=79 // pred_check
          %p705 = pneg %p704
        $region118: #{tpu_custom_call.1} parent=79 // pred_check_branch
          %707 = sbr.rel (%p705) target = $region120
        $region119: #{tpu_custom_call.1} parent=79 // pred_region
          %v708 = vld [vmem:[%s608 + $0x8] sm:$0xff]
          %v709 = vld [vmem:[%s608 + $0x18] sm:$0xff]
          %710 = vadd.xlane.f32.xlu0 %v708
          %v711 = vpop.xlane.xlu0 %710
          %712 = vadd.xlane.f32.xlu0 %v709
          %v713 = vpop.xlane.xlu0 %712
          %v714 = vrcp.pop 128.0
          %v715 = vmul.f32 128.0, %v714
          %v716 = vsub.f32 1.0, %v715
          %v717 = vmul.f32 %v714, %v716
          %v718 = vadd.f32 %v714, %v717
          %vm719 = vweird.f32 %v714
          %v720 = vsel %vm719, %v714, %v718
          %v721 = vmul.f32 %v711, %v720
          %v722 = vmul.f32 %v713, %v720
          %v723 = vsub.f32 %v708, %v721
          %v724 = vsub.f32 %v709, %v722
          %v725 = vmul.f32 %v723, %v723
          %v726 = vmul.f32 %v724, %v724
          %727 = vadd.xlane.f32.xlu0 %v725
          %v728 = vpop.xlane.xlu0 %727
          %729 = vadd.xlane.f32.xlu0 %v726
          %v730 = vpop.xlane.xlu0 %729
          %v731 = vmul.f32 %v728, %v720
          %v732 = vmul.f32 %v730, %v720
          %v733 = vadd.f32 %v731, 1e-05
          %v734 = vadd.f32 %v732, 1e-05
          %v735 = vrsqrt.pop %v733
          %v736 = vmul.f32 %v735, %v733
          %v737 = vmul.f32 %v736, %v735
          %v738 = vmul.f32 0.5, %v737
          %v739 = vsub.f32 1.5, %v738
          %v740 = vmul.f32 %v735, %v739
          %vm741 = vweird.f32 %v733
          %vm742 = vweird.f32 %v735
          %vm743 = vmor %vm741, %vm742
          %v744 = vsel %vm743, %v735, %v740
          %v745 = vrsqrt.pop %v734
          %v746 = vmul.f32 %v745, %v734
          %v747 = vmul.f32 %v746, %v745
          %v748 = vmul.f32 0.5, %v747
          %v749 = vsub.f32 1.5, %v748
          %v750 = vmul.f32 %v745, %v749
          %vm751 = vweird.f32 %v734
          %vm752 = vweird.f32 %v745
          %vm753 = vmor %vm751, %vm752
          %v754 = vsel %vm753, %v745, %v750
          %v755 = vmul.f32 %v723, %v744
          %v756 = vmul.f32 %v724, %v754
          %v757 = vld [vmem:[#allocation12] sm:$0xff]
          %v758 = vld [vmem:[#allocation12 + $0x8] sm:$0xff]
          %v759 = vld [vmem:[#allocation12 + $0x10] sm:$0xff]
          %v760 = vld [vmem:[#allocation12 + $0x18] sm:$0xff]
          %v761 = vld [vmem:[#allocation12 + $0x20] sm:$0xff]
          %v762 = vld [vmem:[#allocation12 + $0x28] sm:$0xff]
          %v763 = vld [vmem:[#allocation12 + $0x30] sm:$0xff]
          %v764 = vld [vmem:[#allocation12 + $0x38] sm:$0xff]
          %v765 = vld [vmem:[#allocation12 + $0x40] sm:$0xff]
          %v766 = vld [vmem:[#allocation12 + $0x48] sm:$0xff]
          %v767 = vld [vmem:[#allocation12 + $0x50] sm:$0xff]
          %v768 = vld [vmem:[#allocation12 + $0x58] sm:$0xff]
          %v769 = vld [vmem:[#allocation12 + $0x60] sm:$0xff]
          %v770 = vld [vmem:[#allocation12 + $0x68] sm:$0xff]
          %v771 = vld [vmem:[#allocation12 + $0x70] sm:$0xff]
          %v772 = vld [vmem:[#allocation12 + $0x78] sm:$0xff]
          %v773 = vld [vmem:[%s6] sm:$0x1]
          %v775 = vperm.slane %v773, 0
          %777 = vmatpush.msra.mxu0 %v772
          %778 = vmatpush.msra.mxu0 %v771
          %779 = vmatpush.msra.mxu0 %v770
          %780 = vmatpush.msra.mxu0 %v769
          %781 = vmatpush.msra.mxu0 %v768
          %782 = vmatpush.msra.mxu0 %v767
          %783 = vmatpush.msra.mxu0 %v766
          %784 = vmatpush.msra.mxu0 %v765
          %785 = vmatpush.msra.mxu0 %v764
          %786 = vmatpush.msra.mxu0 %v763
          %787 = vmatpush.msra.mxu0 %v762
          %788 = vmatpush.msra.mxu0 %v761
          %789 = vmatpush.msra.mxu0 %v760
          %790 = vmatpush.msra.mxu0 %v759
          %791 = vmatpush.msra.mxu0 %v758
          %792 = vmatpush.msra.mxu0 %v757
          %793 = vmatmul.f32.gmra.mxu0 %v755
          %v794 = vpop.f32.mrf.mxu0
          %v795 = vadd.f32 %v775, %v794
          %796 = vmatmul.f32.gmra.mxu0 %v756
          %v797 = vpop.f32.mrf.mxu0
          %v798 = vadd.f32 %v775, %v797
          %799 = vdwg.mxu0
          %v800 = vld [vmem:[#allocation13] sm:$0xff]
          %v801 = vld [vmem:[#allocation13 + $0x8] sm:$0xff]
          %v802 = vld [vmem:[#allocation13 + $0x10] sm:$0xff]
          %v803 = vld [vmem:[#allocation13 + $0x18] sm:$0xff]
          %v804 = vld [vmem:[#allocation13 + $0x20] sm:$0xff]
          %v805 = vld [vmem:[#allocation13 + $0x28] sm:$0xff]
          %v806 = vld [vmem:[#allocation13 + $0x30] sm:$0xff]
          %v807 = vld [vmem:[#allocation13 + $0x38] sm:$0xff]
          %v808 = vld [vmem:[#allocation13 + $0x40] sm:$0xff]
          %v809 = vld [vmem:[#allocation13 + $0x48] sm:$0xff]
          %v810 = vld [vmem:[#allocation13 + $0x50] sm:$0xff]
          %v811 = vld [vmem:[#allocation13 + $0x58] sm:$0xff]
          %v812 = vld [vmem:[#allocation13 + $0x60] sm:$0xff]
          %v813 = vld [vmem:[#allocation13 + $0x68] sm:$0xff]
          %v814 = vld [vmem:[#allocation13 + $0x70] sm:$0xff]
          %v815 = vld [vmem:[#allocation13 + $0x78] sm:$0xff]
          %v816 = vld [vmem:[%s8] sm:$0x1]
          %v818 = vperm.slane %v816, 0
          %820 = vmatpush.msra.mxu0 %v815
          %821 = vmatpush.msra.mxu0 %v814
          %822 = vmatpush.msra.mxu0 %v813
          %823 = vmatpush.msra.mxu0 %v812
          %824 = vmatpush.msra.mxu0 %v811
          %825 = vmatpush.msra.mxu0 %v810
          %826 = vmatpush.msra.mxu0 %v809
          %827 = vmatpush.msra.mxu0 %v808
          %828 = vmatpush.msra.mxu0 %v807
          %829 = vmatpush.msra.mxu0 %v806
          %830 = vmatpush.msra.mxu0 %v805
          %831 = vmatpush.msra.mxu0 %v804
          %832 = vmatpush.msra.mxu0 %v803
          %833 = vmatpush.msra.mxu0 %v802
          %834 = vmatpush.msra.mxu0 %v801
          %835 = vmatpush.msra.mxu0 %v800
          %836 = vmatmul.f32.gmra.mxu0 %v755
          %v837 = vpop.f32.mrf.mxu0
          %v838 = vadd.f32 %v818, %v837
          %839 = vmatmul.f32.gmra.mxu0 %v756
          %v840 = vpop.f32.mrf.mxu0
          %v841 = vadd.f32 %v818, %v840
          %842 = vdwg.mxu0
          %845 = vrot.lane.b32.xlu0 %v795, 96
          %v846 = vpop.permute.xlu0 %845
          %847 = vrot.lane.b32.xlu0 %v798, 96
          %v848 = vpop.permute.xlu0 %847
          %851 = vrot.lane.b32.xlu0 %v795, 64
          %v852 = vpop.permute.xlu0 %851
          %853 = vrot.lane.b32.xlu0 %v798, 64
          %v854 = vpop.permute.xlu0 %853
          %857 = vrot.lane.b32.xlu0 %v795, 32
          %v858 = vpop.permute.xlu0 %857
          %859 = vrot.lane.b32.xlu0 %v798, 32
          %v860 = vpop.permute.xlu0 %859
          %v863 = vrot.slane %v852, 4
          %vm864 = vcmask 1047556
          %v865 = vsel %vm864, %v863, %v795
          %v866 = vrot.slane %v795, 4
          %v867 = vsel %vm864, %v852, %v866
          %v869 = vunpack.c.l.s4 1983009808
          %v870 = vunpack.c.0.s8 %v869
          %v871 = vperm.slane %v865, %v870
          %v873 = vunpack.c.l.s4 1983009808
          %v874 = vunpack.c.0.s8 %v873
          %v875 = vperm.slane %v867, %v874
          %v876 = vrot.slane %v858, 4
          %v877 = vsel %vm864, %v876, %v846
          %v878 = vrot.slane %v846, 4
          %v879 = vsel %vm864, %v858, %v878
          %v881 = vunpack.c.l.s4 1983009808
          %v882 = vunpack.c.0.s8 %v881
          %v883 = vperm.slane %v877, %v882
          %v885 = vunpack.c.l.s4 1983009808
          %v886 = vunpack.c.0.s8 %v885
          %v887 = vperm.slane %v879, %v886
          %v888 = vrot.slane %v883, 4
          %v889 = vsel %vm864, %v888, %v871
          %v890 = vrot.slane %v871, 4
          %v891 = vsel %vm864, %v883, %v890
          %v893 = vunpack.c.l.s4 1934713408
          %v894 = vunpack.c.0.s8 %v893
          %v895 = vperm.slane %v889, %v894
          %v897 = vunpack.c.l.s4 1934713408
          %v898 = vunpack.c.0.s8 %v897
          %v899 = vperm.slane %v891, %v898
          %v900 = vrot.slane %v887, 4
          %v901 = vsel %vm864, %v900, %v875
          %v902 = vrot.slane %v875, 4
          %v903 = vsel %vm864, %v887, %v902
          %v905 = vunpack.c.l.s4 1934713408
          %v906 = vunpack.c.0.s8 %v905
          %v907 = vperm.slane %v901, %v906
          %v909 = vunpack.c.l.s4 1934713408
          %v910 = vunpack.c.0.s8 %v909
          %v911 = vperm.slane %v903, %v910
          %v912 = vrot.slane %v895, 4
          %v913 = vsel %vm864, 0.0, %v912
          %v914 = vrot.slane %v899, 4
          %v915 = vsel %vm864, 0.0, %v914
          %v916 = vrot.slane %v907, 4
          %v917 = vsel %vm864, 0.0, %v916
          %v918 = vrot.slane %v911, 4
          %v919 = vsel %vm864, 0.0, %v918
          %v920 = vrot.slane %v854, 4
          %v921 = vsel %vm864, %v920, %v798
          %v922 = vrot.slane %v798, 4
          %v923 = vsel %vm864, %v854, %v922
          %v925 = vunpack.c.l.s4 1983009808
          %v926 = vunpack.c.0.s8 %v925
          %v927 = vperm.slane %v921, %v926
          %v929 = vunpack.c.l.s4 1983009808
          %v930 = vunpack.c.0.s8 %v929
          %v931 = vperm.slane %v923, %v930
          %v932 = vrot.slane %v860, 4
          %v933 = vsel %vm864, %v932, %v848
          %v934 = vrot.slane %v848, 4
          %v935 = vsel %vm864, %v860, %v934
          %v937 = vunpack.c.l.s4 1983009808
          %v938 = vunpack.c.0.s8 %v937
          %v939 = vperm.slane %v933, %v938
          %v941 = vunpack.c.l.s4 1983009808
          %v942 = vunpack.c.0.s8 %v941
          %v943 = vperm.slane %v935, %v942
          %v944 = vrot.slane %v939, 4
          %v945 = vsel %vm864, %v944, %v927
          %v946 = vrot.slane %v927, 4
          %v947 = vsel %vm864, %v939, %v946
          %v949 = vunpack.c.l.s4 1934713408
          %v950 = vunpack.c.0.s8 %v949
          %v951 = vperm.slane %v945, %v950
          %v953 = vunpack.c.l.s4 1934713408
          %v954 = vunpack.c.0.s8 %v953
          %v955 = vperm.slane %v947, %v954
          %v956 = vrot.slane %v943, 4
          %v957 = vsel %vm864, %v956, %v931
          %v958 = vrot.slane %v931, 4
          %v959 = vsel %vm864, %v943, %v958
          %v961 = vunpack.c.l.s4 1934713408
          %v962 = vunpack.c.0.s8 %v961
          %v963 = vperm.slane %v957, %v962
          %v965 = vunpack.c.l.s4 1934713408
          %v966 = vunpack.c.0.s8 %v965
          %v967 = vperm.slane %v959, %v966
          %v968 = vrot.slane %v951, 4
          %v969 = vsel %vm864, 0.0, %v968
          %v970 = vrot.slane %v955, 4
          %v971 = vsel %vm864, 0.0, %v970
          %v972 = vrot.slane %v963, 4
          %v973 = vsel %vm864, 0.0, %v972
          %v974 = vrot.slane %v967, 4
          %v975 = vsel %vm864, 0.0, %v974
          %v976 = vsel %vm864, %v914, %v895
          %v978 = vunpack.c.l.s4 1983009808
          %v979 = vunpack.c.0.s8 %v978
          %v980 = vperm.slane %v976, %v979
          %v981 = vrot.slane %v915, 4
          %v982 = vsel %vm864, %v981, %v913
          %v984 = vunpack.c.l.s4 1983009808
          %v985 = vunpack.c.0.s8 %v984
          %v986 = vperm.slane %v982, %v985
          %v987 = vsel %vm864, %v918, %v907
          %v989 = vunpack.c.l.s4 1983009808
          %v990 = vunpack.c.0.s8 %v989
          %v991 = vperm.slane %v987, %v990
          %v992 = vrot.slane %v919, 4
          %v993 = vsel %vm864, %v992, %v917
          %v995 = vunpack.c.l.s4 1983009808
          %v996 = vunpack.c.0.s8 %v995
          %v997 = vperm.slane %v993, %v996
          %v998 = vrot.slane %v986, 4
          %v999 = vsel %vm864, %v998, %v980
          %v1000 = vrot.slane %v980, 4
          %v1001 = vsel %vm864, %v986, %v1000
          %v1003 = vunpack.c.l.s4 1934713408
          %v1004 = vunpack.c.0.s8 %v1003
          %v1005 = vperm.slane %v999, %v1004
          %v1007 = vunpack.c.l.s4 1934713408
          %v1008 = vunpack.c.0.s8 %v1007
          %v1009 = vperm.slane %v1001, %v1008
          %v1010 = vrot.slane %v997, 4
          %v1011 = vsel %vm864, %v1010, %v991
          %v1012 = vrot.slane %v991, 4
          %v1013 = vsel %vm864, %v997, %v1012
          %v1015 = vunpack.c.l.s4 1934713408
          %v1016 = vunpack.c.0.s8 %v1015
          %v1017 = vperm.slane %v1011, %v1016
          %v1019 = vunpack.c.l.s4 1934713408
          %v1020 = vunpack.c.0.s8 %v1019
          %v1021 = vperm.slane %v1013, %v1020
          %v1022 = vrot.slane %v1017, 4
          %v1023 = vsel %vm864, %v1022, %v1005
          %v1024 = vrot.slane %v1005, 4
          %v1025 = vsel %vm864, %v1017, %v1024
          %v1026 = vrot.slane %v1021, 4
          %v1027 = vsel %vm864, %v1026, %v1009
          %v1028 = vrot.slane %v1009, 4
          %v1029 = vsel %vm864, %v1021, %v1028
          %v1030 = vsel %vm864, %v970, %v951
          %v1032 = vunpack.c.l.s4 1983009808
          %v1033 = vunpack.c.0.s8 %v1032
          %v1034 = vperm.slane %v1030, %v1033
          %v1035 = vrot.slane %v971, 4
          %v1036 = vsel %vm864, %v1035, %v969
          %v1038 = vunpack.c.l.s4 1983009808
          %v1039 = vunpack.c.0.s8 %v1038
          %v1040 = vperm.slane %v1036, %v1039
          %v1041 = vsel %vm864, %v974, %v963
          %v1043 = vunpack.c.l.s4 1983009808
          %v1044 = vunpack.c.0.s8 %v1043
          %v1045 = vperm.slane %v1041, %v1044
          %v1046 = vrot.slane %v975, 4
          %v1047 = vsel %vm864, %v1046, %v973
          %v1049 = vunpack.c.l.s4 1983009808
          %v1050 = vunpack.c.0.s8 %v1049
          %v1051 = vperm.slane %v1047, %v1050
          %v1052 = vrot.slane %v1040, 4
          %v1053 = vsel %vm864, %v1052, %v1034
          %v1054 = vrot.slane %v1034, 4
          %v1055 = vsel %vm864, %v1040, %v1054
          %v1057 = vunpack.c.l.s4 1934713408
          %v1058 = vunpack.c.0.s8 %v1057
          %v1059 = vperm.slane %v1053, %v1058
          %v1061 = vunpack.c.l.s4 1934713408
          %v1062 = vunpack.c.0.s8 %v1061
          %v1063 = vperm.slane %v1055, %v1062
          %v1064 = vrot.slane %v1051, 4
          %v1065 = vsel %vm864, %v1064, %v1045
          %v1066 = vrot.slane %v1045, 4
          %v1067 = vsel %vm864, %v1051, %v1066
          %v1069 = vunpack.c.l.s4 1934713408
          %v1070 = vunpack.c.0.s8 %v1069
          %v1071 = vperm.slane %v1065, %v1070
          %v1073 = vunpack.c.l.s4 1934713408
          %v1074 = vunpack.c.0.s8 %v1073
          %v1075 = vperm.slane %v1067, %v1074
          %v1076 = vrot.slane %v1071, 4
          %v1077 = vsel %vm864, %v1076, %v1059
          %v1078 = vrot.slane %v1059, 4
          %v1079 = vsel %vm864, %v1071, %v1078
          %v1080 = vrot.slane %v1075, 4
          %v1081 = vsel %vm864, %v1080, %v1063
          %v1082 = vrot.slane %v1063, 4
          %v1083 = vsel %vm864, %v1075, %v1082
          %vm1084 = vcmask 261120
          %1085 = vst.msk [vmem:[#allocation2] sm:$0xff] %vm1084, %v1023
          %1086 = vst.msk [vmem:[#allocation2 + $0x8] sm:$0xff] %vm1084, %v1077
          %1087 = vst.msk [vmem:[#allocation2 + $0x10] sm:$0xff] %vm1084, %v1025
          %1088 = vst.msk [vmem:[#allocation2 + $0x18] sm:$0xff] %vm1084, %v1079
          %1089 = vst.msk [vmem:[#allocation2 + $0x20] sm:$0xff] %vm1084, %v1027
          %1090 = vst.msk [vmem:[#allocation2 + $0x28] sm:$0xff] %vm1084, %v1081
          %1091 = vst.msk [vmem:[#allocation2 + $0x30] sm:$0xff] %vm1084, %v1029
          %1092 = vst.msk [vmem:[#allocation2 + $0x38] sm:$0xff] %vm1084, %v1083
          %1095 = vrot.lane.b32.xlu0 %v838, 96
          %v1096 = vpop.permute.xlu0 %1095
          %1097 = vrot.lane.b32.xlu0 %v841, 96
          %v1098 = vpop.permute.xlu0 %1097
          %1101 = vrot.lane.b32.xlu0 %v838, 64
          %v1102 = vpop.permute.xlu0 %1101
          %1103 = vrot.lane.b32.xlu0 %v841, 64
          %v1104 = vpop.permute.xlu0 %1103
          %1107 = vrot.lane.b32.xlu0 %v838, 32
          %v1108 = vpop.permute.xlu0 %1107
          %1109 = vrot.lane.b32.xlu0 %v841, 32
          %v1110 = vpop.permute.xlu0 %1109
          %v1113 = vrot.slane %v1102, 4
          %v1114 = vsel %vm864, %v1113, %v838
          %v1115 = vrot.slane %v838, 4
          %v1116 = vsel %vm864, %v1102, %v1115
          %v1118 = vunpack.c.l.s4 1983009808
          %v1119 = vunpack.c.0.s8 %v1118
          %v1120 = vperm.slane %v1114, %v1119
          %v1122 = vunpack.c.l.s4 1983009808
          %v1123 = vunpack.c.0.s8 %v1122
          %v1124 = vperm.slane %v1116, %v1123
          %v1125 = vrot.slane %v1108, 4
          %v1126 = vsel %vm864, %v1125, %v1096
          %v1127 = vrot.slane %v1096, 4
          %v1128 = vsel %vm864, %v1108, %v1127
          %v1130 = vunpack.c.l.s4 1983009808
          %v1131 = vunpack.c.0.s8 %v1130
          %v1132 = vperm.slane %v1126, %v1131
          %v1134 = vunpack.c.l.s4 1983009808
          %v1135 = vunpack.c.0.s8 %v1134
          %v1136 = vperm.slane %v1128, %v1135
          %v1137 = vrot.slane %v1132, 4
          %v1138 = vsel %vm864, %v1137, %v1120
          %v1139 = vrot.slane %v1120, 4
          %v1140 = vsel %vm864, %v1132, %v1139
          %v1142 = vunpack.c.l.s4 1934713408
          %v1143 = vunpack.c.0.s8 %v1142
          %v1144 = vperm.slane %v1138, %v1143
          %v1146 = vunpack.c.l.s4 1934713408
          %v1147 = vunpack.c.0.s8 %v1146
          %v1148 = vperm.slane %v1140, %v1147
          %v1149 = vrot.slane %v1136, 4
          %v1150 = vsel %vm864, %v1149, %v1124
          %v1151 = vrot.slane %v1124, 4
          %v1152 = vsel %vm864, %v1136, %v1151
          %v1154 = vunpack.c.l.s4 1934713408
          %v1155 = vunpack.c.0.s8 %v1154
          %v1156 = vperm.slane %v1150, %v1155
          %v1158 = vunpack.c.l.s4 1934713408
          %v1159 = vunpack.c.0.s8 %v1158
          %v1160 = vperm.slane %v1152, %v1159
          %v1161 = vrot.slane %v1144, 4
          %v1162 = vsel %vm864, 0.0, %v1161
          %v1163 = vrot.slane %v1148, 4
          %v1164 = vsel %vm864, 0.0, %v1163
          %v1165 = vrot.slane %v1156, 4
          %v1166 = vsel %vm864, 0.0, %v1165
          %v1167 = vrot.slane %v1160, 4
          %v1168 = vsel %vm864, 0.0, %v1167
          %v1169 = vrot.slane %v1104, 4
          %v1170 = vsel %vm864, %v1169, %v841
          %v1171 = vrot.slane %v841, 4
          %v1172 = vsel %vm864, %v1104, %v1171
          %v1174 = vunpack.c.l.s4 1983009808
          %v1175 = vunpack.c.0.s8 %v1174
          %v1176 = vperm.slane %v1170, %v1175
          %v1178 = vunpack.c.l.s4 1983009808
          %v1179 = vunpack.c.0.s8 %v1178
          %v1180 = vperm.slane %v1172, %v1179
          %v1181 = vrot.slane %v1110, 4
          %v1182 = vsel %vm864, %v1181, %v1098
          %v1183 = vrot.slane %v1098, 4
          %v1184 = vsel %vm864, %v1110, %v1183
          %v1186 = vunpack.c.l.s4 1983009808
          %v1187 = vunpack.c.0.s8 %v1186
          %v1188 = vperm.slane %v1182, %v1187
          %v1190 = vunpack.c.l.s4 1983009808
          %v1191 = vunpack.c.0.s8 %v1190
          %v1192 = vperm.slane %v1184, %v1191
          %v1193 = vrot.slane %v1188, 4
          %v1194 = vsel %vm864, %v1193, %v1176
          %v1195 = vrot.slane %v1176, 4
          %v1196 = vsel %vm864, %v1188, %v1195
          %v1198 = vunpack.c.l.s4 1934713408
          %v1199 = vunpack.c.0.s8 %v1198
          %v1200 = vperm.slane %v1194, %v1199
          %v1202 = vunpack.c.l.s4 1934713408
          %v1203 = vunpack.c.0.s8 %v1202
          %v1204 = vperm.slane %v1196, %v1203
          %v1205 = vrot.slane %v1192, 4
          %v1206 = vsel %vm864, %v1205, %v1180
          %v1207 = vrot.slane %v1180, 4
          %v1208 = vsel %vm864, %v1192, %v1207
          %v1210 = vunpack.c.l.s4 1934713408
          %v1211 = vunpack.c.0.s8 %v1210
          %v1212 = vperm.slane %v1206, %v1211
          %v1214 = vunpack.c.l.s4 1934713408
          %v1215 = vunpack.c.0.s8 %v1214
          %v1216 = vperm.slane %v1208, %v1215
          %v1217 = vrot.slane %v1200, 4
          %v1218 = vsel %vm864, 0.0, %v1217
          %v1219 = vrot.slane %v1204, 4
          %v1220 = vsel %vm864, 0.0, %v1219
          %v1221 = vrot.slane %v1212, 4
          %v1222 = vsel %vm864, 0.0, %v1221
          %v1223 = vrot.slane %v1216, 4
          %v1224 = vsel %vm864, 0.0, %v1223
          %v1225 = vsel %vm864, %v1163, %v1144
          %v1227 = vunpack.c.l.s4 1983009808
          %v1228 = vunpack.c.0.s8 %v1227
          %v1229 = vperm.slane %v1225, %v1228
          %v1230 = vrot.slane %v1164, 4
          %v1231 = vsel %vm864, %v1230, %v1162
          %v1233 = vunpack.c.l.s4 1983009808
          %v1234 = vunpack.c.0.s8 %v1233
          %v1235 = vperm.slane %v1231, %v1234
          %v1236 = vsel %vm864, %v1167, %v1156
          %v1238 = vunpack.c.l.s4 1983009808
          %v1239 = vunpack.c.0.s8 %v1238
          %v1240 = vperm.slane %v1236, %v1239
          %v1241 = vrot.slane %v1168, 4
          %v1242 = vsel %vm864, %v1241, %v1166
          %v1244 = vunpack.c.l.s4 1983009808
          %v1245 = vunpack.c.0.s8 %v1244
          %v1246 = vperm.slane %v1242, %v1245
          %v1247 = vrot.slane %v1235, 4
          %v1248 = vsel %vm864, %v1247, %v1229
          %v1249 = vrot.slane %v1229, 4
          %v1250 = vsel %vm864, %v1235, %v1249
          %v1252 = vunpack.c.l.s4 1934713408
          %v1253 = vunpack.c.0.s8 %v1252
          %v1254 = vperm.slane %v1248, %v1253
          %v1256 = vunpack.c.l.s4 1934713408
          %v1257 = vunpack.c.0.s8 %v1256
          %v1258 = vperm.slane %v1250, %v1257
          %v1259 = vrot.slane %v1246, 4
          %v1260 = vsel %vm864, %v1259, %v1240
          %v1261 = vrot.slane %v1240, 4
          %v1262 = vsel %vm864, %v1246, %v1261
          %v1264 = vunpack.c.l.s4 1934713408
          %v1265 = vunpack.c.0.s8 %v1264
          %v1266 = vperm.slane %v1260, %v1265
          %v1268 = vunpack.c.l.s4 1934713408
          %v1269 = vunpack.c.0.s8 %v1268
          %v1270 = vperm.slane %v1262, %v1269
          %v1271 = vrot.slane %v1266, 4
          %v1272 = vsel %vm864, %v1271, %v1254
          %v1273 = vrot.slane %v1254, 4
          %v1274 = vsel %vm864, %v1266, %v1273
          %v1275 = vrot.slane %v1270, 4
          %v1276 = vsel %vm864, %v1275, %v1258
          %v1277 = vrot.slane %v1258, 4
          %v1278 = vsel %vm864, %v1270, %v1277
          %v1279 = vsel %vm864, %v1219, %v1200
          %v1281 = vunpack.c.l.s4 1983009808
          %v1282 = vunpack.c.0.s8 %v1281
          %v1283 = vperm.slane %v1279, %v1282
          %v1284 = vrot.slane %v1220, 4
          %v1285 = vsel %vm864, %v1284, %v1218
          %v1287 = vunpack.c.l.s4 1983009808
          %v1288 = vunpack.c.0.s8 %v1287
          %v1289 = vperm.slane %v1285, %v1288
          %v1290 = vsel %vm864, %v1223, %v1212
          %v1292 = vunpack.c.l.s4 1983009808
          %v1293 = vunpack.c.0.s8 %v1292
          %v1294 = vperm.slane %v1290, %v1293
          %v1295 = vrot.slane %v1224, 4
          %v1296 = vsel %vm864, %v1295, %v1222
          %v1298 = vunpack.c.l.s4 1983009808
          %v1299 = vunpack.c.0.s8 %v1298
          %v1300 = vperm.slane %v1296, %v1299
          %v1301 = vrot.slane %v1289, 4
          %v1302 = vsel %vm864, %v1301, %v1283
          %v1303 = vrot.slane %v1283, 4
          %v1304 = vsel %vm864, %v1289, %v1303
          %v1306 = vunpack.c.l.s4 1934713408
          %v1307 = vunpack.c.0.s8 %v1306
          %v1308 = vperm.slane %v1302, %v1307
          %v1310 = vunpack.c.l.s4 1934713408
          %v1311 = vunpack.c.0.s8 %v1310
          %v1312 = vperm.slane %v1304, %v1311
          %v1313 = vrot.slane %v1300, 4
          %v1314 = vsel %vm864, %v1313, %v1294
          %v1315 = vrot.slane %v1294, 4
          %v1316 = vsel %vm864, %v1300, %v1315
          %v1318 = vunpack.c.l.s4 1934713408
          %v1319 = vunpack.c.0.s8 %v1318
          %v1320 = vperm.slane %v1314, %v1319
          %v1322 = vunpack.c.l.s4 1934713408
          %v1323 = vunpack.c.0.s8 %v1322
          %v1324 = vperm.slane %v1316, %v1323
          %v1325 = vrot.slane %v1320, 4
          %v1326 = vsel %vm864, %v1325, %v1308
          %v1327 = vrot.slane %v1308, 4
          %v1328 = vsel %vm864, %v1320, %v1327
          %v1329 = vrot.slane %v1324, 4
          %v1330 = vsel %vm864, %v1329, %v1312
          %v1331 = vrot.slane %v1312, 4
          %v1332 = vsel %vm864, %v1324, %v1331
          %1333 = vst.msk [vmem:[#allocation3] sm:$0xff] %vm1084, %v1272
          %1334 = vst.msk [vmem:[#allocation3 + $0x8] sm:$0xff] %vm1084, %v1326
          %1335 = vst.msk [vmem:[#allocation3 + $0x10] sm:$0xff] %vm1084, %v1274
          %1336 = vst.msk [vmem:[#allocation3 + $0x18] sm:$0xff] %vm1084, %v1328
          %1337 = vst.msk [vmem:[#allocation3 + $0x20] sm:$0xff] %vm1084, %v1276
          %1338 = vst.msk [vmem:[#allocation3 + $0x28] sm:$0xff] %vm1084, %v1330
          %1339 = vst.msk [vmem:[#allocation3 + $0x30] sm:$0xff] %vm1084, %v1278
          %1340 = vst.msk [vmem:[#allocation3 + $0x38] sm:$0xff] %vm1084, %v1332
        $region120: #{tpu_custom_call.1} parent=79 // pred_fallthru
          _
        %v1341 = vld [vmem:[%s598] sm:$0xff]
        %v1342 = vld [vmem:[%s598 + $0x8] sm:$0xff]
        %1343 = vadd.xlane.f32.xlu0 %v1342
        %v1344 = vpop.xlane.xlu0 %1343
        %v1345 = vrcp.pop 128.0
        %v1346 = vmul.f32 128.0, %v1345
        %v1347 = vsub.f32 1.0, %v1346
        %v1348 = vmul.f32 %v1345, %v1347
        %v1349 = vadd.f32 %v1345, %v1348
        %vm1350 = vweird.f32 %v1345
        %v1351 = vsel %vm1350, %v1345, %v1349
        %v1352 = vmul.f32 %v1344, %v1351
        %v1353 = vsub.f32 %v1342, %v1352
        %v1354 = vmul.f32 %v1353, %v1353
        %1355 = vadd.xlane.f32.xlu0 %v1354
        %v1356 = vpop.xlane.xlu0 %1355
        %v1357 = vmul.f32 %v1356, %v1351
        %v1358 = vadd.f32 %v1357, 1e-05
        %v1359 = vrsqrt.pop %v1358
        %v1360 = vmul.f32 %v1359, %v1358
        %v1361 = vmul.f32 %v1360, %v1359
        %v1362 = vmul.f32 0.5, %v1361
        %v1363 = vsub.f32 1.5, %v1362
        %v1364 = vmul.f32 %v1359, %v1363
        %vm1365 = vweird.f32 %v1358
        %vm1366 = vweird.f32 %v1359
        %vm1367 = vmor %vm1365, %vm1366
        %v1368 = vsel %vm1367, %v1359, %v1364
        %v1369 = vmul.f32 %v1353, %v1368
        %v1370 = vld [vmem:[#allocation10] sm:$0xff]
        %v1371 = vld [vmem:[#allocation10 + $0x8] sm:$0xff]
        %v1372 = vld [vmem:[#allocation10 + $0x10] sm:$0xff]
        %v1373 = vld [vmem:[#allocation10 + $0x18] sm:$0xff]
        %v1374 = vld [vmem:[#allocation10 + $0x20] sm:$0xff]
        %v1375 = vld [vmem:[#allocation10 + $0x28] sm:$0xff]
        %v1376 = vld [vmem:[#allocation10 + $0x30] sm:$0xff]
        %v1377 = vld [vmem:[#allocation10 + $0x38] sm:$0xff]
        %v1378 = vld [vmem:[#allocation10 + $0x40] sm:$0xff]
        %v1379 = vld [vmem:[#allocation10 + $0x48] sm:$0xff]
        %v1380 = vld [vmem:[#allocation10 + $0x50] sm:$0xff]
        %v1381 = vld [vmem:[#allocation10 + $0x58] sm:$0xff]
        %v1382 = vld [vmem:[#allocation10 + $0x60] sm:$0xff]
        %v1383 = vld [vmem:[#allocation10 + $0x68] sm:$0xff]
        %v1384 = vld [vmem:[#allocation10 + $0x70] sm:$0xff]
        %v1385 = vld [vmem:[#allocation10 + $0x78] sm:$0xff]
        %v1386 = vld [vmem:[%s4] sm:$0x1]
        %v1388 = vperm.slane %v1386, 0
        %1390 = vmatpush.msra.mxu0 %v1385
        %1391 = vmatpush.msra.mxu0 %v1384
        %1392 = vmatpush.msra.mxu0 %v1383
        %1393 = vmatpush.msra.mxu0 %v1382
        %1394 = vmatpush.msra.mxu0 %v1381
        %1395 = vmatpush.msra.mxu0 %v1380
        %1396 = vmatpush.msra.mxu0 %v1379
        %1397 = vmatpush.msra.mxu0 %v1378
        %1398 = vmatpush.msra.mxu0 %v1377
        %1399 = vmatpush.msra.mxu0 %v1376
        %1400 = vmatpush.msra.mxu0 %v1375
        %1401 = vmatpush.msra.mxu0 %v1374
        %1402 = vmatpush.msra.mxu0 %v1373
        %1403 = vmatpush.msra.mxu0 %v1372
        %1404 = vmatpush.msra.mxu0 %v1371
        %1405 = vmatpush.msra.mxu0 %v1370
        %1406 = vmatmul.f32.gmra.mxu0 %v1369
        %v1407 = vpop.f32.mrf.mxu0
        %v1408 = vadd.f32 %v1388, %v1407
        %1409 = vdwg.mxu0
        %1411 = vrot.lane.b32.xlu0 %v1408, 96
        %v1412 = vpop.permute.xlu0 %1411
        %1414 = vrot.lane.b32.xlu0 %v1408, 64
        %v1415 = vpop.permute.xlu0 %1414
        %1417 = vrot.lane.b32.xlu0 %v1408, 32
        %v1418 = vpop.permute.xlu0 %1417
        %v1420 = vrot.slane %v1415, 4
        %vm1421 = vcmask 1047556
        %v1422 = vsel %vm1421, %v1420, %v1408
        %v1423 = vrot.slane %v1408, 4
        %v1424 = vsel %vm1421, %v1415, %v1423
        %v1426 = vunpack.c.l.s4 1983009808
        %v1427 = vunpack.c.0.s8 %v1426
        %v1428 = vperm.slane %v1422, %v1427
        %v1430 = vunpack.c.l.s4 1983009808
        %v1431 = vunpack.c.0.s8 %v1430
        %v1432 = vperm.slane %v1424, %v1431
        %v1433 = vrot.slane %v1418, 4
        %v1434 = vsel %vm1421, %v1433, %v1412
        %v1435 = vrot.slane %v1412, 4
        %v1436 = vsel %vm1421, %v1418, %v1435
        %v1438 = vunpack.c.l.s4 1983009808
        %v1439 = vunpack.c.0.s8 %v1438
        %v1440 = vperm.slane %v1434, %v1439
        %v1442 = vunpack.c.l.s4 1983009808
        %v1443 = vunpack.c.0.s8 %v1442
        %v1444 = vperm.slane %v1436, %v1443
        %v1445 = vrot.slane %v1440, 4
        %v1446 = vsel %vm1421, %v1445, %v1428
        %v1447 = vrot.slane %v1428, 4
        %v1448 = vsel %vm1421, %v1440, %v1447
        %v1450 = vunpack.c.l.s4 1934713408
        %v1451 = vunpack.c.0.s8 %v1450
        %v1452 = vperm.slane %v1446, %v1451
        %v1454 = vunpack.c.l.s4 1934713408
        %v1455 = vunpack.c.0.s8 %v1454
        %v1456 = vperm.slane %v1448, %v1455
        %v1457 = vrot.slane %v1444, 4
        %v1458 = vsel %vm1421, %v1457, %v1432
        %v1459 = vrot.slane %v1432, 4
        %v1460 = vsel %vm1421, %v1444, %v1459
        %v1462 = vunpack.c.l.s4 1934713408
        %v1463 = vunpack.c.0.s8 %v1462
        %v1464 = vperm.slane %v1458, %v1463
        %v1466 = vunpack.c.l.s4 1934713408
        %v1467 = vunpack.c.0.s8 %v1466
        %v1468 = vperm.slane %v1460, %v1467
        %v1469 = vrot.slane %v1452, 4
        %v1470 = vsel %vm1421, 0.0, %v1469
        %v1471 = vrot.slane %v1456, 4
        %v1472 = vsel %vm1421, 0.0, %v1471
        %v1473 = vrot.slane %v1464, 4
        %v1474 = vsel %vm1421, 0.0, %v1473
        %v1475 = vrot.slane %v1468, 4
        %v1476 = vsel %vm1421, 0.0, %v1475
        %v1477 = vsel %vm1421, %v1471, %v1452
        %v1479 = vunpack.c.l.s4 1983009808
        %v1480 = vunpack.c.0.s8 %v1479
        %v1481 = vperm.slane %v1477, %v1480
        %v1482 = vrot.slane %v1472, 4
        %v1483 = vsel %vm1421, %v1482, %v1470
        %v1485 = vunpack.c.l.s4 1983009808
        %v1486 = vunpack.c.0.s8 %v1485
        %v1487 = vperm.slane %v1483, %v1486
        %v1488 = vsel %vm1421, %v1475, %v1464
        %v1490 = vunpack.c.l.s4 1983009808
        %v1491 = vunpack.c.0.s8 %v1490
        %v1492 = vperm.slane %v1488, %v1491
        %v1493 = vrot.slane %v1476, 4
        %v1494 = vsel %vm1421, %v1493, %v1474
        %v1496 = vunpack.c.l.s4 1983009808
        %v1497 = vunpack.c.0.s8 %v1496
        %v1498 = vperm.slane %v1494, %v1497
        %v1499 = vrot.slane %v1487, 4
        %v1500 = vsel %vm1421, %v1499, %v1481
        %v1501 = vrot.slane %v1481, 4
        %v1502 = vsel %vm1421, %v1487, %v1501
        %v1504 = vunpack.c.l.s4 1934713408
        %v1505 = vunpack.c.0.s8 %v1504
        %v1506 = vperm.slane %v1500, %v1505
        %v1508 = vunpack.c.l.s4 1934713408
        %v1509 = vunpack.c.0.s8 %v1508
        %v1510 = vperm.slane %v1502, %v1509
        %v1511 = vrot.slane %v1498, 4
        %v1512 = vsel %vm1421, %v1511, %v1492
        %v1513 = vrot.slane %v1492, 4
        %v1514 = vsel %vm1421, %v1498, %v1513
        %v1516 = vunpack.c.l.s4 1934713408
        %v1517 = vunpack.c.0.s8 %v1516
        %v1518 = vperm.slane %v1512, %v1517
        %v1520 = vunpack.c.l.s4 1934713408
        %v1521 = vunpack.c.0.s8 %v1520
        %v1522 = vperm.slane %v1514, %v1521
        %v1523 = vrot.slane %v1518, 4
        %v1524 = vsel %vm1421, %v1523, %v1506
        %v1525 = vrot.slane %v1506, 4
        %v1526 = vsel %vm1421, %v1518, %v1525
        %v1527 = vrot.slane %v1522, 4
        %v1528 = vsel %vm1421, %v1527, %v1510
        %v1529 = vrot.slane %v1510, 4
        %v1530 = vsel %vm1421, %v1522, %v1529
        %v1531 = vld [vmem:[#allocation2] sm:$0xff]
        %v1532 = vld [vmem:[#allocation2 + $0x8] sm:$0xff]
        %v1533 = vld [vmem:[#allocation2 + $0x10] sm:$0xff]
        %v1534 = vld [vmem:[#allocation2 + $0x18] sm:$0xff]
        %v1535 = vld [vmem:[#allocation2 + $0x20] sm:$0xff]
        %v1536 = vld [vmem:[#allocation2 + $0x28] sm:$0xff]
        %v1537 = vld [vmem:[#allocation2 + $0x30] sm:$0xff]
        %v1538 = vld [vmem:[#allocation2 + $0x38] sm:$0xff]
        %v1539 = vld [vmem:[#allocation3] sm:$0xff]
        %v1540 = vld [vmem:[#allocation3 + $0x8] sm:$0xff]
        %v1541 = vld [vmem:[#allocation3 + $0x10] sm:$0xff]
        %v1542 = vld [vmem:[#allocation3 + $0x18] sm:$0xff]
        %v1543 = vld [vmem:[#allocation3 + $0x20] sm:$0xff]
        %v1544 = vld [vmem:[#allocation3 + $0x28] sm:$0xff]
        %v1545 = vld [vmem:[#allocation3 + $0x30] sm:$0xff]
        %v1546 = vld [vmem:[#allocation3 + $0x38] sm:$0xff]
        %vm1547 = vcmask 261120
        %v1549 = vsel %vm1547, %v1524, 0
        %v1552 = vsel %vm1547, %v1531, 0
        %v1555 = vsel %vm1547, %v1532, 0
        %1557 = vmatpush.xpose.msra.mxu0 0.0
        %1558 = vmatpush.xpose.msra.mxu0 0.0
        %1559 = vmatpush.xpose.msra.mxu0 0.0
        %1560 = vmatpush.xpose.msra.mxu0 0.0
        %1561 = vmatpush.xpose.msra.mxu0 0.0
        %1562 = vmatpush.xpose.msra.mxu0 0.0
        %1563 = vmatpush.xpose.msra.mxu0 0.0
        %1564 = vmatpush.xpose.msra.mxu0 0.0
        %1565 = vmatpush.xpose.msra.mxu0 0.0
        %1566 = vmatpush.xpose.msra.mxu0 0.0
        %1567 = vmatpush.xpose.msra.mxu0 0.0
        %1568 = vmatpush.xpose.msra.mxu0 0.0
        %1569 = vmatpush.xpose.msra.mxu0 0.0
        %1570 = vmatpush.xpose.msra.mxu0 0.0
        %1571 = vmatpush.xpose.msra.mxu0 %v1555
        %1572 = vmatpush.xpose.msra.mxu0 %v1552
        %1573 = vmatmul.f32.gmra.mxu0 %v1549
        %v1574 = vpop.f32.mrf.mxu0
        %v1575 = vadd.f32 0.0, %v1574
        %1576 = vdwg.mxu0
        %v1578 = vsel %vm1547, %v1526, 0
        %v1581 = vsel %vm1547, %v1533, 0
        %v1584 = vsel %vm1547, %v1534, 0
        %1586 = vmatpush.xpose.msra.mxu0 0.0
        %1587 = vmatpush.xpose.msra.mxu0 0.0
        %1588 = vmatpush.xpose.msra.mxu0 0.0
        %1589 = vmatpush.xpose.msra.mxu0 0.0
        %1590 = vmatpush.xpose.msra.mxu0 0.0
        %1591 = vmatpush.xpose.msra.mxu0 0.0
        %1592 = vmatpush.xpose.msra.mxu0 0.0
        %1593 = vmatpush.xpose.msra.mxu0 0.0
        %1594 = vmatpush.xpose.msra.mxu0 0.0
        %1595 = vmatpush.xpose.msra.mxu0 0.0
        %1596 = vmatpush.xpose.msra.mxu0 0.0
        %1597 = vmatpush.xpose.msra.mxu0 0.0
        %1598 = vmatpush.xpose.msra.mxu0 0.0
        %1599 = vmatpush.xpose.msra.mxu0 0.0
        %1600 = vmatpush.xpose.msra.mxu0 %v1584
        %1601 = vmatpush.xpose.msra.mxu0 %v1581
        %1602 = vmatmul.f32.gmra.mxu0 %v1578
        %v1603 = vpop.f32.mrf.mxu0
        %v1604 = vadd.f32 0.0, %v1603
        %1605 = vdwg.mxu0
        %v1607 = vsel %vm1547, %v1528, 0
        %v1610 = vsel %vm1547, %v1535, 0
        %v1613 = vsel %vm1547, %v1536, 0
        %1615 = vmatpush.xpose.msra.mxu0 0.0
        %1616 = vmatpush.xpose.msra.mxu0 0.0
        %1617 = vmatpush.xpose.msra.mxu0 0.0
        %1618 = vmatpush.xpose.msra.mxu0 0.0
        %1619 = vmatpush.xpose.msra.mxu0 0.0
        %1620 = vmatpush.xpose.msra.mxu0 0.0
        %1621 = vmatpush.xpose.msra.mxu0 0.0
        %1622 = vmatpush.xpose.msra.mxu0 0.0
        %1623 = vmatpush.xpose.msra.mxu0 0.0
        %1624 = vmatpush.xpose.msra.mxu0 0.0
        %1625 = vmatpush.xpose.msra.mxu0 0.0
        %1626 = vmatpush.xpose.msra.mxu0 0.0
        %1627 = vmatpush.xpose.msra.mxu0 0.0
        %1628 = vmatpush.xpose.msra.mxu0 0.0
        %1629 = vmatpush.xpose.msra.mxu0 %v1613
        %1630 = vmatpush.xpose.msra.mxu0 %v1610
        %1631 = vmatmul.f32.gmra.mxu0 %v1607
        %v1632 = vpop.f32.mrf.mxu0
        %v1633 = vadd.f32 0.0, %v1632
        %1634 = vdwg.mxu0
        %v1636 = vsel %vm1547, %v1530, 0
        %v1639 = vsel %vm1547, %v1537, 0
        %v1642 = vsel %vm1547, %v1538, 0
        %1644 = vmatpush.xpose.msra.mxu0 0.0
        %1645 = vmatpush.xpose.msra.mxu0 0.0
        %1646 = vmatpush.xpose.msra.mxu0 0.0
        %1647 = vmatpush.xpose.msra.mxu0 0.0
        %1648 = vmatpush.xpose.msra.mxu0 0.0
        %1649 = vmatpush.xpose.msra.mxu0 0.0
        %1650 = vmatpush.xpose.msra.mxu0 0.0
        %1651 = vmatpush.xpose.msra.mxu0 0.0
        %1652 = vmatpush.xpose.msra.mxu0 0.0
        %1653 = vmatpush.xpose.msra.mxu0 0.0
        %1654 = vmatpush.xpose.msra.mxu0 0.0
        %1655 = vmatpush.xpose.msra.mxu0 0.0
        %1656 = vmatpush.xpose.msra.mxu0 0.0
        %1657 = vmatpush.xpose.msra.mxu0 0.0
        %1658 = vmatpush.xpose.msra.mxu0 %v1642
        %1659 = vmatpush.xpose.msra.mxu0 %v1639
        %1660 = vmatmul.f32.gmra.mxu0 %v1636
        %v1661 = vpop.f32.mrf.mxu0
        %v1662 = vadd.f32 0.0, %v1661
        %1663 = vdwg.mxu0
        %v1664 = vmul.f32 %v1575, 0.17677669
        %v1665 = vmul.f32 %v1604, 0.17677669
        %v1666 = vmul.f32 %v1633, 0.17677669
        %v1667 = vmul.f32 %v1662, 0.17677669
        %v1668 = vld [vmem:[%s617] sm:$0x1]
        %v1669 = vmul.f32 %v1668, -1e+30
        %v1671 = vperm.slane %v1669, 0
        %v1673 = vadd.f32 %v1664, %v1671
        %v1674 = vadd.f32 %v1665, %v1671
        %v1675 = vadd.f32 %v1666, %v1671
        %v1676 = vadd.f32 %v1667, %v1671
        %vm1677 = vcmask 130048
        %v1678 = vsel %vm1677, %v1673, -inf
        %1679 = vmax.xlane.f32.xlu0 %v1678
        %v1680 = vpop.xlane.xlu0 %1679
        %v1681 = vsel %vm1677, %v1674, -inf
        %1682 = vmax.xlane.f32.xlu0 %v1681
        %v1683 = vpop.xlane.xlu0 %1682
        %v1684 = vsel %vm1677, %v1675, -inf
        %1685 = vmax.xlane.f32.xlu0 %v1684
        %v1686 = vpop.xlane.xlu0 %1685
        %v1687 = vsel %vm1677, %v1676, -inf
        %1688 = vmax.xlane.f32.xlu0 %v1687
        %v1689 = vpop.xlane.xlu0 %1688
        %v1690 = vsub.f32 %v1673, %v1680
        %v1691 = vsub.f32 %v1674, %v1683
        %v1692 = vsub.f32 %v1675, %v1686
        %v1693 = vsub.f32 %v1676, %v1689
        %v1694 = vmul.f32 %v1690, 1.442695
        %v1695 = vpow.pop %v1694
        %v1696 = vmul.f32 %v1691, 1.442695
        %v1697 = vpow.pop %v1696
        %v1698 = vmul.f32 %v1692, 1.442695
        %v1699 = vpow.pop %v1698
        %v1700 = vmul.f32 %v1693, 1.442695
        %v1701 = vpow.pop %v1700
        %v1702 = vsel %vm1677, %v1695, 0.0
        %1703 = vadd.xlane.f32.xlu0 %v1702
        %v1704 = vpop.xlane.xlu0 %1703
        %v1705 = vsel %vm1677, %v1697, 0.0
        %1706 = vadd.xlane.f32.xlu0 %v1705
        %v1707 = vpop.xlane.xlu0 %1706
        %v1708 = vsel %vm1677, %v1699, 0.0
        %1709 = vadd.xlane.f32.xlu0 %v1708
        %v1710 = vpop.xlane.xlu0 %1709
        %v1711 = vsel %vm1677, %v1701, 0.0
        %1712 = vadd.xlane.f32.xlu0 %v1711
        %v1713 = vpop.xlane.xlu0 %1712
        %v1714 = vrcp.pop %v1704
        %v1715 = vrcp.pop %v1707
        %v1716 = vrcp.pop %v1710
        %v1717 = vrcp.pop %v1713
        %v1718 = vmul.f32 %v1695, %v1714
        %v1719 = vmul.f32 %v1697, %v1715
        %v1720 = vmul.f32 %v1699, %v1716
        %v1721 = vmul.f32 %v1701, %v1717
        %v1723 = vsel %vm1677, %v1718, 0
        %1725 = vmatpush.msra.mxu0 0.0
        %1726 = vmatpush.msra.mxu0 0.0
        %1727 = vmatpush.msra.mxu0 0.0
        %1728 = vmatpush.msra.mxu0 0.0
        %1729 = vmatpush.msra.mxu0 0.0
        %1730 = vmatpush.msra.mxu0 0.0
        %1731 = vmatpush.msra.mxu0 0.0
        %1732 = vmatpush.msra.mxu0 0.0
        %1733 = vmatpush.msra.mxu0 0.0
        %1734 = vmatpush.msra.mxu0 0.0
        %1735 = vmatpush.msra.mxu0 0.0
        %1736 = vmatpush.msra.mxu0 0.0
        %1737 = vmatpush.msra.mxu0 0.0
        %1738 = vmatpush.msra.mxu0 0.0
        %1739 = vmatpush.msra.mxu0 %v1540
        %1740 = vmatpush.msra.mxu0 %v1539
        %1741 = vmatmul.f32.gmra.mxu0 %v1723
        %v1742 = vpop.f32.mrf.mxu0
        %v1743 = vadd.f32 0.0, %v1742
        %1744 = vdwg.mxu0
        %v1746 = vsel %vm1677, %v1719, 0
        %1748 = vmatpush.msra.mxu0 0.0
        %1749 = vmatpush.msra.mxu0 0.0
        %1750 = vmatpush.msra.mxu0 0.0
        %1751 = vmatpush.msra.mxu0 0.0
        %1752 = vmatpush.msra.mxu0 0.0
        %1753 = vmatpush.msra.mxu0 0.0
        %1754 = vmatpush.msra.mxu0 0.0
        %1755 = vmatpush.msra.mxu0 0.0
        %1756 = vmatpush.msra.mxu0 0.0
        %1757 = vmatpush.msra.mxu0 0.0
        %1758 = vmatpush.msra.mxu0 0.0
        %1759 = vmatpush.msra.mxu0 0.0
        %1760 = vmatpush.msra.mxu0 0.0
        %1761 = vmatpush.msra.mxu0 0.0
        %1762 = vmatpush.msra.mxu0 %v1542
        %1763 = vmatpush.msra.mxu0 %v1541
        %1764 = vmatmul.f32.gmra.mxu0 %v1746
        %v1765 = vpop.f32.mrf.mxu0
        %v1766 = vadd.f32 0.0, %v1765
        %1767 = vdwg.mxu0
        %v1769 = vsel %vm1677, %v1720, 0
        %1771 = vmatpush.msra.mxu0 0.0
        %1772 = vmatpush.msra.mxu0 0.0
        %1773 = vmatpush.msra.mxu0 0.0
        %1774 = vmatpush.msra.mxu0 0.0
        %1775 = vmatpush.msra.mxu0 0.0
        %1776 = vmatpush.msra.mxu0 0.0
        %1777 = vmatpush.msra.mxu0 0.0
        %1778 = vmatpush.msra.mxu0 0.0
        %1779 = vmatpush.msra.mxu0 0.0
        %1780 = vmatpush.msra.mxu0 0.0
        %1781 = vmatpush.msra.mxu0 0.0
        %1782 = vmatpush.msra.mxu0 0.0
        %1783 = vmatpush.msra.mxu0 0.0
        %1784 = vmatpush.msra.mxu0 0.0
        %1785 = vmatpush.msra.mxu0 %v1544
        %1786 = vmatpush.msra.mxu0 %v1543
        %1787 = vmatmul.f32.gmra.mxu0 %v1769
        %v1788 = vpop.f32.mrf.mxu0
        %v1789 = vadd.f32 0.0, %v1788
        %1790 = vdwg.mxu0
        %v1792 = vsel %vm1677, %v1721, 0
        %1794 = vmatpush.msra.mxu0 0.0
        %1795 = vmatpush.msra.mxu0 0.0
        %1796 = vmatpush.msra.mxu0 0.0
        %1797 = vmatpush.msra.mxu0 0.0
        %1798 = vmatpush.msra.mxu0 0.0
        %1799 = vmatpush.msra.mxu0 0.0
        %1800 = vmatpush.msra.mxu0 0.0
        %1801 = vmatpush.msra.mxu0 0.0
        %1802 = vmatpush.msra.mxu0 0.0
        %1803 = vmatpush.msra.mxu0 0.0
        %1804 = vmatpush.msra.mxu0 0.0
        %1805 = vmatpush.msra.mxu0 0.0
        %1806 = vmatpush.msra.mxu0 0.0
        %1807 = vmatpush.msra.mxu0 0.0
        %1808 = vmatpush.msra.mxu0 %v1546
        %1809 = vmatpush.msra.mxu0 %v1545
        %1810 = vmatmul.f32.gmra.mxu0 %v1792
        %v1811 = vpop.f32.mrf.mxu0
        %v1812 = vadd.f32 0.0, %v1811
        %1813 = vdwg.mxu0
        %v1814 = vrot.slane %v1789, 4
        %v1815 = vsel %vm1421, %v1814, %v1743
        %v1816 = vrot.slane %v1743, 4
        %v1817 = vsel %vm1421, %v1789, %v1816
        %v1819 = vunpack.c.l.s4 1983009808
        %v1820 = vunpack.c.0.s8 %v1819
        %v1821 = vperm.slane %v1815, %v1820
        %v1823 = vunpack.c.l.s4 1983009808
        %v1824 = vunpack.c.0.s8 %v1823
        %v1825 = vperm.slane %v1817, %v1824
        %v1826 = vrot.slane %v1812, 4
        %v1827 = vsel %vm1421, %v1826, %v1766
        %v1828 = vrot.slane %v1766, 4
        %v1829 = vsel %vm1421, %v1812, %v1828
        %v1831 = vunpack.c.l.s4 1983009808
        %v1832 = vunpack.c.0.s8 %v1831
        %v1833 = vperm.slane %v1827, %v1832
        %v1835 = vunpack.c.l.s4 1983009808
        %v1836 = vunpack.c.0.s8 %v1835
        %v1837 = vperm.slane %v1829, %v1836
        %v1838 = vrot.slane %v1833, 4
        %v1839 = vsel %vm1421, %v1838, %v1821
        %v1840 = vrot.slane %v1821, 4
        %v1841 = vsel %vm1421, %v1833, %v1840
        %v1843 = vunpack.c.l.s4 1934713408
        %v1844 = vunpack.c.0.s8 %v1843
        %v1845 = vperm.slane %v1839, %v1844
        %v1847 = vunpack.c.l.s4 1934713408
        %v1848 = vunpack.c.0.s8 %v1847
        %v1849 = vperm.slane %v1841, %v1848
        %v1850 = vrot.slane %v1837, 4
        %v1851 = vsel %vm1421, %v1850, %v1825
        %v1852 = vrot.slane %v1825, 4
        %v1853 = vsel %vm1421, %v1837, %v1852
        %v1855 = vunpack.c.l.s4 1934713408
        %v1856 = vunpack.c.0.s8 %v1855
        %v1857 = vperm.slane %v1851, %v1856
        %v1859 = vunpack.c.l.s4 1934713408
        %v1860 = vunpack.c.0.s8 %v1859
        %v1861 = vperm.slane %v1853, %v1860
        %v1862 = vrot.slane %v1845, 4
        %v1863 = vsel %vm1421, 0.0, %v1862
        %v1864 = vrot.slane %v1849, 4
        %v1865 = vsel %vm1421, 0.0, %v1864
        %v1866 = vrot.slane %v1857, 4
        %v1867 = vsel %vm1421, 0.0, %v1866
        %v1868 = vrot.slane %v1861, 4
        %v1869 = vsel %vm1421, 0.0, %v1868
        %v1870 = vsel %vm1421, %v1864, %v1845
        %v1872 = vunpack.c.l.s4 1983009808
        %v1873 = vunpack.c.0.s8 %v1872
        %v1874 = vperm.slane %v1870, %v1873
        %v1875 = vrot.slane %v1865, 4
        %v1876 = vsel %vm1421, %v1875, %v1863
        %v1878 = vunpack.c.l.s4 1983009808
        %v1879 = vunpack.c.0.s8 %v1878
        %v1880 = vperm.slane %v1876, %v1879
        %v1881 = vsel %vm1421, %v1868, %v1857
        %v1883 = vunpack.c.l.s4 1983009808
        %v1884 = vunpack.c.0.s8 %v1883
        %v1885 = vperm.slane %v1881, %v1884
        %v1886 = vrot.slane %v1869, 4
        %v1887 = vsel %vm1421, %v1886, %v1867
        %v1889 = vunpack.c.l.s4 1983009808
        %v1890 = vunpack.c.0.s8 %v1889
        %v1891 = vperm.slane %v1887, %v1890
        %v1892 = vrot.slane %v1880, 4
        %v1893 = vsel %vm1421, %v1892, %v1874
        %v1894 = vrot.slane %v1874, 4
        %v1895 = vsel %vm1421, %v1880, %v1894
        %v1897 = vunpack.c.l.s4 1934713408
        %v1898 = vunpack.c.0.s8 %v1897
        %v1899 = vperm.slane %v1893, %v1898
        %v1901 = vunpack.c.l.s4 1934713408
        %v1902 = vunpack.c.0.s8 %v1901
        %v1903 = vperm.slane %v1895, %v1902
        %v1904 = vrot.slane %v1891, 4
        %v1905 = vsel %vm1421, %v1904, %v1885
        %v1906 = vrot.slane %v1885, 4
        %v1907 = vsel %vm1421, %v1891, %v1906
        %v1909 = vunpack.c.l.s4 1934713408
        %v1910 = vunpack.c.0.s8 %v1909
        %v1911 = vperm.slane %v1905, %v1910
        %v1913 = vunpack.c.l.s4 1934713408
        %v1914 = vunpack.c.0.s8 %v1913
        %v1915 = vperm.slane %v1907, %v1914
        %v1916 = vrot.slane %v1911, 4
        %v1917 = vsel %vm1421, %v1916, %v1899
        %v1918 = vrot.slane %v1899, 4
        %v1919 = vsel %vm1421, %v1911, %v1918
        %v1920 = vrot.slane %v1915, 4
        %v1921 = vsel %vm1421, %v1920, %v1903
        %v1922 = vrot.slane %v1903, 4
        %v1923 = vsel %vm1421, %v1915, %v1922
        %1925 = vrot.lane.b32.xlu0 %v1919, 32
        %v1926 = vpop.permute.xlu0 %1925
        %1929 = vrot.lane.b32.xlu0 %v1921, 64
        %v1930 = vpop.permute.xlu0 %1929
        %1933 = vrot.lane.b32.xlu0 %v1923, 96
        %v1934 = vpop.permute.xlu0 %1933
        %v1936 = vsel %vm1547, %v1917, %v1926
        %vm1937 = vcmask 523264
        %v1938 = vsel %vm1937, %v1936, %v1930
        %vm1939 = vcmask 785408
        %v1940 = vsel %vm1939, %v1938, %v1934
        %v1941 = vld [vmem:[#allocation15] sm:$0xff]
        %v1942 = vld [vmem:[#allocation15 + $0x8] sm:$0xff]
        %v1943 = vld [vmem:[#allocation15 + $0x10] sm:$0xff]
        %v1944 = vld [vmem:[#allocation15 + $0x18] sm:$0xff]
        %v1945 = vld [vmem:[#allocation15 + $0x20] sm:$0xff]
        %v1946 = vld [vmem:[#allocation15 + $0x28] sm:$0xff]
        %v1947 = vld [vmem:[#allocation15 + $0x30] sm:$0xff]
        %v1948 = vld [vmem:[#allocation15 + $0x38] sm:$0xff]
        %v1949 = vld [vmem:[#allocation15 + $0x40] sm:$0xff]
        %v1950 = vld [vmem:[#allocation15 + $0x48] sm:$0xff]
        %v1951 = vld [vmem:[#allocation15 + $0x50] sm:$0xff]
        %v1952 = vld [vmem:[#allocation15 + $0x58] sm:$0xff]
        %v1953 = vld [vmem:[#allocation15 + $0x60] sm:$0xff]
        %v1954 = vld [vmem:[#allocation15 + $0x68] sm:$0xff]
        %v1955 = vld [vmem:[#allocation15 + $0x70] sm:$0xff]
        %v1956 = vld [vmem:[#allocation15 + $0x78] sm:$0xff]
        %v1957 = vld [vmem:[%s10] sm:$0x1]
        %v1959 = vperm.slane %v1957, 0
        %1961 = vmatpush.msra.mxu0 %v1956
        %1962 = vmatpush.msra.mxu0 %v1955
        %1963 = vmatpush.msra.mxu0 %v1954
        %1964 = vmatpush.msra.mxu0 %v1953
        %1965 = vmatpush.msra.mxu0 %v1952
        %1966 = vmatpush.msra.mxu0 %v1951
        %1967 = vmatpush.msra.mxu0 %v1950
        %1968 = vmatpush.msra.mxu0 %v1949
        %1969 = vmatpush.msra.mxu0 %v1948
        %1970 = vmatpush.msra.mxu0 %v1947
        %1971 = vmatpush.msra.mxu0 %v1946
        %1972 = vmatpush.msra.mxu0 %v1945
        %1973 = vmatpush.msra.mxu0 %v1944
        %1974 = vmatpush.msra.mxu0 %v1943
        %1975 = vmatpush.msra.mxu0 %v1942
        %1976 = vmatpush.msra.mxu0 %v1941
        %1977 = vmatmul.f32.gmra.mxu0 %v1940
        %v1978 = vpop.f32.mrf.mxu0
        %v1979 = vadd.f32 %v1959, %v1978
        %1980 = vdwg.mxu0
        %v1981 = vadd.f32 %v1341, %v1979
        %1982 = vadd.xlane.f32.xlu0 %v1981
        %v1983 = vpop.xlane.xlu0 %1982
        %v1984 = vmul.f32 %v1983, %v1351
        %v1985 = vsub.f32 %v1981, %v1984
        %v1986 = vmul.f32 %v1985, %v1985
        %1987 = vadd.xlane.f32.xlu0 %v1986
        %v1988 = vpop.xlane.xlu0 %1987
        %v1989 = vmul.f32 %v1988, %v1351
        %v1990 = vadd.f32 %v1989, 1e-05
        %v1991 = vrsqrt.pop %v1990
        %v1992 = vmul.f32 %v1991, %v1990
        %v1993 = vmul.f32 %v1992, %v1991
        %v1994 = vmul.f32 0.5, %v1993
        %v1995 = vsub.f32 1.5, %v1994
        %v1996 = vmul.f32 %v1991, %v1995
        %vm1997 = vweird.f32 %v1990
        %vm1998 = vweird.f32 %v1991
        %vm1999 = vmor %vm1997, %vm1998
        %v2000 = vsel %vm1999, %v1991, %v1996
        %v2001 = vmul.f32 %v1985, %v2000
        %v2002 = vld [vmem:[#allocation16] sm:$0xff]
        %v2003 = vld [vmem:[#allocation16 + $0x8] sm:$0xff]
        %v2004 = vld [vmem:[#allocation16 + $0x20] sm:$0xff]
        %v2005 = vld [vmem:[#allocation16 + $0x28] sm:$0xff]
        %v2006 = vld [vmem:[#allocation16 + $0x40] sm:$0xff]
        %v2007 = vld [vmem:[#allocation16 + $0x48] sm:$0xff]
        %v2008 = vld [vmem:[#allocation16 + $0x60] sm:$0xff]
        %v2009 = vld [vmem:[#allocation16 + $0x68] sm:$0xff]
        %v2010 = vld [vmem:[#allocation16 + $0x80] sm:$0xff]
        %v2011 = vld [vmem:[#allocation16 + $0x88] sm:$0xff]
        %v2012 = vld [vmem:[#allocation16 + $0xa0] sm:$0xff]
        %v2013 = vld [vmem:[#allocation16 + $0xa8] sm:$0xff]
        %v2014 = vld [vmem:[#allocation16 + $0xc0] sm:$0xff]
        %v2015 = vld [vmem:[#allocation16 + $0xc8] sm:$0xff]
        %v2016 = vld [vmem:[#allocation16 + $0xe0] sm:$0xff]
        %v2017 = vld [vmem:[#allocation16 + $0xe8] sm:$0xff]
        %v2018 = vld [vmem:[#allocation16 + $0x100] sm:$0xff]
        %v2019 = vld [vmem:[#allocation16 + $0x108] sm:$0xff]
        %v2020 = vld [vmem:[#allocation16 + $0x120] sm:$0xff]
        %v2021 = vld [vmem:[#allocation16 + $0x128] sm:$0xff]
        %v2022 = vld [vmem:[#allocation16 + $0x140] sm:$0xff]
        %v2023 = vld [vmem:[#allocation16 + $0x148] sm:$0xff]
        %v2024 = vld [vmem:[#allocation16 + $0x160] sm:$0xff]
        %v2025 = vld [vmem:[#allocation16 + $0x168] sm:$0xff]
        %v2026 = vld [vmem:[#allocation16 + $0x180] sm:$0xff]
        %v2027 = vld [vmem:[#allocation16 + $0x188] sm:$0xff]
        %v2028 = vld [vmem:[#allocation16 + $0x1a0] sm:$0xff]
        %v2029 = vld [vmem:[#allocation16 + $0x1a8] sm:$0xff]
        %v2030 = vld [vmem:[#allocation16 + $0x1c0] sm:$0xff]
        %v2031 = vld [vmem:[#allocation16 + $0x1c8] sm:$0xff]
        %v2032 = vld [vmem:[#allocation16 + $0x1e0] sm:$0xff]
        %v2033 = vld [vmem:[#allocation16 + $0x1e8] sm:$0xff]
        %v2034 = vld [vmem:[%s12] sm:$0x3]
        %v2036 = vperm.slane %v2034, 0
        %v2037 = vperm.slane %v2034, 1
        %2040 = vmatpush.msra.mxu0 %v2032
        %2041 = vmatpush.msra.mxu0 %v2030
        %2042 = vmatpush.msra.mxu0 %v2028
        %2043 = vmatpush.msra.mxu0 %v2026
        %2044 = vmatpush.msra.mxu0 %v2024
        %2045 = vmatpush.msra.mxu0 %v2022
        %2046 = vmatpush.msra.mxu0 %v2020
        %2047 = vmatpush.msra.mxu0 %v2018
        %2048 = vmatpush.msra.mxu0 %v2016
        %2049 = vmatpush.msra.mxu0 %v2014
        %2050 = vmatpush.msra.mxu0 %v2012
        %2051 = vmatpush.msra.mxu0 %v2010
        %2052 = vmatpush.msra.mxu0 %v2008
        %2053 = vmatpush.msra.mxu0 %v2006
        %2054 = vmatpush.msra.mxu0 %v2004
        %2055 = vmatpush.msra.mxu0 %v2002
        %2056 = vmatmul.f32.gmra.mxu0 %v2001
        %v2057 = vpop.f32.mrf.mxu0
        %v2058 = vadd.f32 %v2036, %v2057
        %2059 = vdwg.mxu0
        %2060 = vmatpush.msra.mxu0 %v2033
        %2061 = vmatpush.msra.mxu0 %v2031
        %2062 = vmatpush.msra.mxu0 %v2029
        %2063 = vmatpush.msra.mxu0 %v2027
        %2064 = vmatpush.msra.mxu0 %v2025
        %2065 = vmatpush.msra.mxu0 %v2023
        %2066 = vmatpush.msra.mxu0 %v2021
        %2067 = vmatpush.msra.mxu0 %v2019
        %2068 = vmatpush.msra.mxu0 %v2017
        %2069 = vmatpush.msra.mxu0 %v2015
        %2070 = vmatpush.msra.mxu0 %v2013
        %2071 = vmatpush.msra.mxu0 %v2011
        %2072 = vmatpush.msra.mxu0 %v2009
        %2073 = vmatpush.msra.mxu0 %v2007
        %2074 = vmatpush.msra.mxu0 %v2005
        %2075 = vmatpush.msra.mxu0 %v2003
        %2076 = vmatmul.f32.gmra.mxu0 %v2001
        %v2077 = vpop.f32.mrf.mxu0
        %v2078 = vadd.f32 %v2037, %v2077
        %2079 = vdwg.mxu0
        %v2080 = vmul.f32 %v2058, 0.5
        %v2081 = vmul.f32 %v2078, 0.5
        %v2082 = vmul.f32 %v2058, 0.70710677
        %v2083 = vmul.f32 %v2078, 0.70710677
        %v2084 = vmul.f32 %v2082, %v2082
        %v2085 = vmin.f32 16.0, %v2084
        %v2086 = vmul.f32 %v2085, 2.1237322e-06
        %v2087 = vadd.f32 %v2086, 0.00028619796
        %v2088 = vmul.f32 %v2085, %v2087
        %v2089 = vadd.f32 %v2088, 0.0036580483
        %v2090 = vmul.f32 %v2085, %v2089
        %v2091 = vadd.f32 %v2090, 0.05243302
        %v2092 = vmul.f32 %v2085, %v2091
        %v2093 = vadd.f32 %v2092, 0.18741608
        %v2094 = vmul.f32 %v2085, %v2093
        %v2095 = vadd.f32 %v2094, 1.1283791
        %v2096 = vmul.f32 %v2082, %v2095
        %v2097 = vmul.f32 %v2085, 3.8918573e-05
        %v2098 = vadd.f32 %v2097, 0.001143296
        %v2099 = vmul.f32 %v2085, %v2098
        %v2100 = vadd.f32 %v2099, 0.014752088
        %v2101 = vmul.f32 %v2085, %v2100
        %v2102 = vadd.f32 %v2101, 0.112945676
        %v2103 = vmul.f32 %v2085, %v2102
        %v2104 = vadd.f32 %v2103, 0.4994258
        %v2105 = vmul.f32 %v2085, %v2104
        %v2106 = vadd.f32 %v2105, 1.0
        %v2107 = vrcp.pop %v2106
        %v2108 = vmul.f32 %v2106, %v2107
        %v2109 = vsub.f32 1.0, %v2108
        %v2110 = vmul.f32 %v2107, %v2109
        %v2111 = vadd.f32 %v2107, %v2110
        %vm2112 = vweird.f32 %v2106
        %vm2113 = vweird.f32 %v2107
        %vm2114 = vmor %vm2112, %vm2113
        %v2115 = vsel %vm2114, %v2107, %v2111
        %v2116 = vand.u32 2147483647, %v2106
        %vm2117 = vcmp.eq.f32.partialorder %v2116, 8.507059e+37
        %v2118 = vand.u32 %v2106, 2147483648
        %v2119 = vor.u32 1.1754944e-38, %v2118
        %v2120 = vsel %vm2117, %v2119, %v2115
        %v2121 = vmul.f32 %v2096, %v2120
        %v2122 = vmin.f32 %v2121, 1.0
        %v2123 = vmax.f32 %v2122, -1.0
        %v2124 = vmul.f32 %v2083, %v2083
        %v2125 = vmin.f32 16.0, %v2124
        %v2126 = vmul.f32 %v2125, 2.1237322e-06
        %v2127 = vadd.f32 %v2126, 0.00028619796
        %v2128 = vmul.f32 %v2125, %v2127
        %v2129 = vadd.f32 %v2128, 0.0036580483
        %v2130 = vmul.f32 %v2125, %v2129
        %v2131 = vadd.f32 %v2130, 0.05243302
        %v2132 = vmul.f32 %v2125, %v2131
        %v2133 = vadd.f32 %v2132, 0.18741608
        %v2134 = vmul.f32 %v2125, %v2133
        %v2135 = vadd.f32 %v2134, 1.1283791
        %v2136 = vmul.f32 %v2083, %v2135
        %v2137 = vmul.f32 %v2125, 3.8918573e-05
        %v2138 = vadd.f32 %v2137, 0.001143296
        %v2139 = vmul.f32 %v2125, %v2138
        %v2140 = vadd.f32 %v2139, 0.014752088
        %v2141 = vmul.f32 %v2125, %v2140
        %v2142 = vadd.f32 %v2141, 0.112945676
        %v2143 = vmul.f32 %v2125, %v2142
        %v2144 = vadd.f32 %v2143, 0.4994258
        %v2145 = vmul.f32 %v2125, %v2144
        %v2146 = vadd.f32 %v2145, 1.0
        %v2147 = vrcp.pop %v2146
        %v2148 = vmul.f32 %v2146, %v2147
        %v2149 = vsub.f32 1.0, %v2148
        %v2150 = vmul.f32 %v2147, %v2149
        %v2151 = vadd.f32 %v2147, %v2150
        %vm2152 = vweird.f32 %v2146
        %vm2153 = vweird.f32 %v2147
        %vm2154 = vmor %vm2152, %vm2153
        %v2155 = vsel %vm2154, %v2147, %v2151
        %v2156 = vand.u32 2147483647, %v2146
        %vm2157 = vcmp.eq.f32.partialorder %v2156, 8.507059e+37
        %v2158 = vand.u32 %v2146, 2147483648
        %v2159 = vor.u32 1.1754944e-38, %v2158
        %v2160 = vsel %vm2157, %v2159, %v2155
        %v2161 = vmul.f32 %v2136, %v2160
        %v2162 = vmin.f32 %v2161, 1.0
        %v2163 = vmax.f32 %v2162, -1.0
        %v2164 = vadd.f32 %v2123, 1.0
        %v2165 = vadd.f32 %v2163, 1.0
        %v2166 = vmul.f32 %v2080, %v2164
        %v2167 = vmul.f32 %v2081, %v2165
        %v2168 = vld [vmem:[#allocation18] sm:$0xff]
        %v2169 = vld [vmem:[#allocation18 + $0x8] sm:$0xff]
        %v2170 = vld [vmem:[#allocation18 + $0x10] sm:$0xff]
        %v2171 = vld [vmem:[#allocation18 + $0x18] sm:$0xff]
        %v2172 = vld [vmem:[#allocation18 + $0x20] sm:$0xff]
        %v2173 = vld [vmem:[#allocation18 + $0x28] sm:$0xff]
        %v2174 = vld [vmem:[#allocation18 + $0x30] sm:$0xff]
        %v2175 = vld [vmem:[#allocation18 + $0x38] sm:$0xff]
        %v2176 = vld [vmem:[#allocation18 + $0x40] sm:$0xff]
        %v2177 = vld [vmem:[#allocation18 + $0x48] sm:$0xff]
        %v2178 = vld [vmem:[#allocation18 + $0x50] sm:$0xff]
        %v2179 = vld [vmem:[#allocation18 + $0x58] sm:$0xff]
        %v2180 = vld [vmem:[#allocation18 + $0x60] sm:$0xff]
        %v2181 = vld [vmem:[#allocation18 + $0x68] sm:$0xff]
        %v2182 = vld [vmem:[#allocation18 + $0x70] sm:$0xff]
        %v2183 = vld [vmem:[#allocation18 + $0x78] sm:$0xff]
        %v2184 = vld [vmem:[#allocation18 + $0x80] sm:$0xff]
        %v2185 = vld [vmem:[#allocation18 + $0x88] sm:$0xff]
        %v2186 = vld [vmem:[#allocation18 + $0x90] sm:$0xff]
        %v2187 = vld [vmem:[#allocation18 + $0x98] sm:$0xff]
        %v2188 = vld [vmem:[#allocation18 + $0xa0] sm:$0xff]
        %v2189 = vld [vmem:[#allocation18 + $0xa8] sm:$0xff]
        %v2190 = vld [vmem:[#allocation18 + $0xb0] sm:$0xff]
        %v2191 = vld [vmem:[#allocation18 + $0xb8] sm:$0xff]
        %v2192 = vld [vmem:[#allocation18 + $0xc0] sm:$0xff]
        %v2193 = vld [vmem:[#allocation18 + $0xc8] sm:$0xff]
        %v2194 = vld [vmem:[#allocation18 + $0xd0] sm:$0xff]
        %v2195 = vld [vmem:[#allocation18 + $0xd8] sm:$0xff]
        %v2196 = vld [vmem:[#allocation18 + $0xe0] sm:$0xff]
        %v2197 = vld [vmem:[#allocation18 + $0xe8] sm:$0xff]
        %v2198 = vld [vmem:[#allocation18 + $0xf0] sm:$0xff]
        %v2199 = vld [vmem:[#allocation18 + $0xf8] sm:$0xff]
        %v2200 = vld [vmem:[#allocation16 + $0x10] sm:$0xff]
        %v2201 = vld [vmem:[#allocation16 + $0x18] sm:$0xff]
        %v2202 = vld [vmem:[#allocation16 + $0x30] sm:$0xff]
        %v2203 = vld [vmem:[#allocation16 + $0x38] sm:$0xff]
        %v2204 = vld [vmem:[#allocation16 + $0x50] sm:$0xff]
        %v2205 = vld [vmem:[#allocation16 + $0x58] sm:$0xff]
        %v2206 = vld [vmem:[#allocation16 + $0x70] sm:$0xff]
        %v2207 = vld [vmem:[#allocation16 + $0x78] sm:$0xff]
        %v2208 = vld [vmem:[#allocation16 + $0x90] sm:$0xff]
        %v2209 = vld [vmem:[#allocation16 + $0x98] sm:$0xff]
        %v2210 = vld [vmem:[#allocation16 + $0xb0] sm:$0xff]
        %v2211 = vld [vmem:[#allocation16 + $0xb8] sm:$0xff]
        %v2212 = vld [vmem:[#allocation16 + $0xd0] sm:$0xff]
        %v2213 = vld [vmem:[#allocation16 + $0xd8] sm:$0xff]
        %v2214 = vld [vmem:[#allocation16 + $0xf0] sm:$0xff]
        %v2215 = vld [vmem:[#allocation16 + $0xf8] sm:$0xff]
        %v2216 = vld [vmem:[#allocation16 + $0x110] sm:$0xff]
        %v2217 = vld [vmem:[#allocation16 + $0x118] sm:$0xff]
        %v2218 = vld [vmem:[#allocation16 + $0x130] sm:$0xff]
        %v2219 = vld [vmem:[#allocation16 + $0x138] sm:$0xff]
        %v2220 = vld [vmem:[#allocation16 + $0x150] sm:$0xff]
        %v2221 = vld [vmem:[#allocation16 + $0x158] sm:$0xff]
        %v2222 = vld [vmem:[#allocation16 + $0x170] sm:$0xff]
        %v2223 = vld [vmem:[#allocation16 + $0x178] sm:$0xff]
        %v2224 = vld [vmem:[#allocation16 + $0x190] sm:$0xff]
        %v2225 = vld [vmem:[#allocation16 + $0x198] sm:$0xff]
        %v2226 = vld [vmem:[#allocation16 + $0x1b0] sm:$0xff]
        %v2227 = vld [vmem:[#allocation16 + $0x1b8] sm:$0xff]
        %v2228 = vld [vmem:[#allocation16 + $0x1d0] sm:$0xff]
        %v2229 = vld [vmem:[#allocation16 + $0x1d8] sm:$0xff]
        %v2230 = vld [vmem:[#allocation16 + $0x1f0] sm:$0xff]
        %v2231 = vld [vmem:[#allocation16 + $0x1f8] sm:$0xff]
        %v2232 = vld [vmem:[%s12 + $0x2] sm:$0x3]
        %v2234 = vperm.slane %v2232, 0
        %v2235 = vperm.slane %v2232, 1
        %2238 = vmatpush.msra.mxu0 %v2230
        %2239 = vmatpush.msra.mxu0 %v2228
        %2240 = vmatpush.msra.mxu0 %v2226
        %2241 = vmatpush.msra.mxu0 %v2224
        %2242 = vmatpush.msra.mxu0 %v2222
        %2243 = vmatpush.msra.mxu0 %v2220
        %2244 = vmatpush.msra.mxu0 %v2218
        %2245 = vmatpush.msra.mxu0 %v2216
        %2246 = vmatpush.msra.mxu0 %v2214
        %2247 = vmatpush.msra.mxu0 %v2212
        %2248 = vmatpush.msra.mxu0 %v2210
        %2249 = vmatpush.msra.mxu0 %v2208
        %2250 = vmatpush.msra.mxu0 %v2206
        %2251 = vmatpush.msra.mxu0 %v2204
        %2252 = vmatpush.msra.mxu0 %v2202
        %2253 = vmatpush.msra.mxu0 %v2200
        %2254 = vmatmul.f32.gmra.mxu0 %v2001
        %v2255 = vpop.f32.mrf.mxu0
        %v2256 = vadd.f32 %v2234, %v2255
        %2257 = vdwg.mxu0
        %2258 = vmatpush.msra.mxu0 %v2231
        %2259 = vmatpush.msra.mxu0 %v2229
        %2260 = vmatpush.msra.mxu0 %v2227
        %2261 = vmatpush.msra.mxu0 %v2225
        %2262 = vmatpush.msra.mxu0 %v2223
        %2263 = vmatpush.msra.mxu0 %v2221
        %2264 = vmatpush.msra.mxu0 %v2219
        %2265 = vmatpush.msra.mxu0 %v2217
        %2266 = vmatpush.msra.mxu0 %v2215
        %2267 = vmatpush.msra.mxu0 %v2213
        %2268 = vmatpush.msra.mxu0 %v2211
        %2269 = vmatpush.msra.mxu0 %v2209
        %2270 = vmatpush.msra.mxu0 %v2207
        %2271 = vmatpush.msra.mxu0 %v2205
        %2272 = vmatpush.msra.mxu0 %v2203
        %2273 = vmatpush.msra.mxu0 %v2201
        %2274 = vmatmul.f32.gmra.mxu0 %v2001
        %v2275 = vpop.f32.mrf.mxu0
        %v2276 = vadd.f32 %v2235, %v2275
        %2277 = vdwg.mxu0
        %v2278 = vmul.f32 %v2256, 0.5
        %v2279 = vmul.f32 %v2276, 0.5
        %v2280 = vmul.f32 %v2256, 0.70710677
        %v2281 = vmul.f32 %v2276, 0.70710677
        %v2282 = vmul.f32 %v2280, %v2280
        %v2283 = vmin.f32 16.0, %v2282
        %v2284 = vmul.f32 %v2283, 2.1237322e-06
        %v2285 = vadd.f32 %v2284, 0.00028619796
        %v2286 = vmul.f32 %v2283, %v2285
        %v2287 = vadd.f32 %v2286, 0.0036580483
        %v2288 = vmul.f32 %v2283, %v2287
        %v2289 = vadd.f32 %v2288, 0.05243302
        %v2290 = vmul.f32 %v2283, %v2289
        %v2291 = vadd.f32 %v2290, 0.18741608
        %v2292 = vmul.f32 %v2283, %v2291
        %v2293 = vadd.f32 %v2292, 1.1283791
        %v2294 = vmul.f32 %v2280, %v2293
        %v2295 = vmul.f32 %v2283, 3.8918573e-05
        %v2296 = vadd.f32 %v2295, 0.001143296
        %v2297 = vmul.f32 %v2283, %v2296
        %v2298 = vadd.f32 %v2297, 0.014752088
        %v2299 = vmul.f32 %v2283, %v2298
        %v2300 = vadd.f32 %v2299, 0.112945676
        %v2301 = vmul.f32 %v2283, %v2300
        %v2302 = vadd.f32 %v2301, 0.4994258
        %v2303 = vmul.f32 %v2283, %v2302
        %v2304 = vadd.f32 %v2303, 1.0
        %v2305 = vrcp.pop %v2304
        %v2306 = vmul.f32 %v2304, %v2305
        %v2307 = vsub.f32 1.0, %v2306
        %v2308 = vmul.f32 %v2305, %v2307
        %v2309 = vadd.f32 %v2305, %v2308
        %vm2310 = vweird.f32 %v2304
        %vm2311 = vweird.f32 %v2305
        %vm2312 = vmor %vm2310, %vm2311
        %v2313 = vsel %vm2312, %v2305, %v2309
        %v2314 = vand.u32 2147483647, %v2304
        %vm2315 = vcmp.eq.f32.partialorder %v2314, 8.507059e+37
        %v2316 = vand.u32 %v2304, 2147483648
        %v2317 = vor.u32 1.1754944e-38, %v2316
        %v2318 = vsel %vm2315, %v2317, %v2313
        %v2319 = vmul.f32 %v2294, %v2318
        %v2320 = vmin.f32 %v2319, 1.0
        %v2321 = vmax.f32 %v2320, -1.0
        %v2322 = vmul.f32 %v2281, %v2281
        %v2323 = vmin.f32 16.0, %v2322
        %v2324 = vmul.f32 %v2323, 2.1237322e-06
        %v2325 = vadd.f32 %v2324, 0.00028619796
        %v2326 = vmul.f32 %v2323, %v2325
        %v2327 = vadd.f32 %v2326, 0.0036580483
        %v2328 = vmul.f32 %v2323, %v2327
        %v2329 = vadd.f32 %v2328, 0.05243302
        %v2330 = vmul.f32 %v2323, %v2329
        %v2331 = vadd.f32 %v2330, 0.18741608
        %v2332 = vmul.f32 %v2323, %v2331
        %v2333 = vadd.f32 %v2332, 1.1283791
        %v2334 = vmul.f32 %v2281, %v2333
        %v2335 = vmul.f32 %v2323, 3.8918573e-05
        %v2336 = vadd.f32 %v2335, 0.001143296
        %v2337 = vmul.f32 %v2323, %v2336
        %v2338 = vadd.f32 %v2337, 0.014752088
        %v2339 = vmul.f32 %v2323, %v2338
        %v2340 = vadd.f32 %v2339, 0.112945676
        %v2341 = vmul.f32 %v2323, %v2340
        %v2342 = vadd.f32 %v2341, 0.4994258
        %v2343 = vmul.f32 %v2323, %v2342
        %v2344 = vadd.f32 %v2343, 1.0
        %v2345 = vrcp.pop %v2344
        %v2346 = vmul.f32 %v2344, %v2345
        %v2347 = vsub.f32 1.0, %v2346
        %v2348 = vmul.f32 %v2345, %v2347
        %v2349 = vadd.f32 %v2345, %v2348
        %vm2350 = vweird.f32 %v2344
        %vm2351 = vweird.f32 %v2345
        %vm2352 = vmor %vm2350, %vm2351
        %v2353 = vsel %vm2352, %v2345, %v2349
        %v2354 = vand.u32 2147483647, %v2344
        %vm2355 = vcmp.eq.f32.partialorder %v2354, 8.507059e+37
        %v2356 = vand.u32 %v2344, 2147483648
        %v2357 = vor.u32 1.1754944e-38, %v2356
        %v2358 = vsel %vm2355, %v2357, %v2353
        %v2359 = vmul.f32 %v2334, %v2358
        %v2360 = vmin.f32 %v2359, 1.0
        %v2361 = vmax.f32 %v2360, -1.0
        %v2362 = vadd.f32 %v2321, 1.0
        %v2363 = vadd.f32 %v2361, 1.0
        %v2364 = vmul.f32 %v2278, %v2362
        %v2365 = vmul.f32 %v2279, %v2363
        %v2366 = vld [vmem:[#allocation18 + $0x100] sm:$0xff]
        %v2367 = vld [vmem:[#allocation18 + $0x108] sm:$0xff]
        %v2368 = vld [vmem:[#allocation18 + $0x110] sm:$0xff]
        %v2369 = vld [vmem:[#allocation18 + $0x118] sm:$0xff]
        %v2370 = vld [vmem:[#allocation18 + $0x120] sm:$0xff]
        %v2371 = vld [vmem:[#allocation18 + $0x128] sm:$0xff]
        %v2372 = vld [vmem:[#allocation18 + $0x130] sm:$0xff]
        %v2373 = vld [vmem:[#allocation18 + $0x138] sm:$0xff]
        %v2374 = vld [vmem:[#allocation18 + $0x140] sm:$0xff]
        %v2375 = vld [vmem:[#allocation18 + $0x148] sm:$0xff]
        %v2376 = vld [vmem:[#allocation18 + $0x150] sm:$0xff]
        %v2377 = vld [vmem:[#allocation18 + $0x158] sm:$0xff]
        %v2378 = vld [vmem:[#allocation18 + $0x160] sm:$0xff]
        %v2379 = vld [vmem:[#allocation18 + $0x168] sm:$0xff]
        %v2380 = vld [vmem:[#allocation18 + $0x170] sm:$0xff]
        %v2381 = vld [vmem:[#allocation18 + $0x178] sm:$0xff]
        %v2382 = vld [vmem:[#allocation18 + $0x180] sm:$0xff]
        %v2383 = vld [vmem:[#allocation18 + $0x188] sm:$0xff]
        %v2384 = vld [vmem:[#allocation18 + $0x190] sm:$0xff]
        %v2385 = vld [vmem:[#allocation18 + $0x198] sm:$0xff]
        %v2386 = vld [vmem:[#allocation18 + $0x1a0] sm:$0xff]
        %v2387 = vld [vmem:[#allocation18 + $0x1a8] sm:$0xff]
        %v2388 = vld [vmem:[#allocation18 + $0x1b0] sm:$0xff]
        %v2389 = vld [vmem:[#allocation18 + $0x1b8] sm:$0xff]
        %v2390 = vld [vmem:[#allocation18 + $0x1c0] sm:$0xff]
        %v2391 = vld [vmem:[#allocation18 + $0x1c8] sm:$0xff]
        %v2392 = vld [vmem:[#allocation18 + $0x1d0] sm:$0xff]
        %v2393 = vld [vmem:[#allocation18 + $0x1d8] sm:$0xff]
        %v2394 = vld [vmem:[#allocation18 + $0x1e0] sm:$0xff]
        %v2395 = vld [vmem:[#allocation18 + $0x1e8] sm:$0xff]
        %v2396 = vld [vmem:[#allocation18 + $0x1f0] sm:$0xff]
        %v2397 = vld [vmem:[#allocation18 + $0x1f8] sm:$0xff]
        %2398 = vmatpush.msra.mxu0 %v2381
        %2399 = vmatpush.msra.mxu0 %v2380
        %2400 = vmatpush.msra.mxu0 %v2379
        %2401 = vmatpush.msra.mxu0 %v2378
        %2402 = vmatpush.msra.mxu0 %v2377
        %2403 = vmatpush.msra.mxu0 %v2376
        %2404 = vmatpush.msra.mxu0 %v2375
        %2405 = vmatpush.msra.mxu0 %v2374
        %2406 = vmatpush.msra.mxu0 %v2373
        %2407 = vmatpush.msra.mxu0 %v2372
        %2408 = vmatpush.msra.mxu0 %v2371
        %2409 = vmatpush.msra.mxu0 %v2370
        %2410 = vmatpush.msra.mxu0 %v2369
        %2411 = vmatpush.msra.mxu0 %v2368
        %2412 = vmatpush.msra.mxu0 %v2367
        %2413 = vmatpush.msra.mxu0 %v2366
        %2414 = vmatmul.f32.gmra.mxu0 %v2364
        %v2415 = vpop.f32.mrf.mxu0
        %v2416 = vadd.f32 0.0, %v2415
        %2417 = vdwg.mxu0
        %2418 = vmatpush.msra.mxu0 %v2397
        %2419 = vmatpush.msra.mxu0 %v2396
        %2420 = vmatpush.msra.mxu0 %v2395
        %2421 = vmatpush.msra.mxu0 %v2394
        %2422 = vmatpush.msra.mxu0 %v2393
        %2423 = vmatpush.msra.mxu0 %v2392
        %2424 = vmatpush.msra.mxu0 %v2391
        %2425 = vmatpush.msra.mxu0 %v2390
        %2426 = vmatpush.msra.mxu0 %v2389
        %2427 = vmatpush.msra.mxu0 %v2388
        %2428 = vmatpush.msra.mxu0 %v2387
        %2429 = vmatpush.msra.mxu0 %v2386
        %2430 = vmatpush.msra.mxu0 %v2385
        %2431 = vmatpush.msra.mxu0 %v2384
        %2432 = vmatpush.msra.mxu0 %v2383
        %2433 = vmatpush.msra.mxu0 %v2382
        %2434 = vmatmul.f32.gmra.mxu0 %v2365
        %v2435 = vpop.f32.mrf.mxu0
        %v2436 = vadd.f32 %v2416, %v2435
        %2437 = vdwg.mxu0
        %2438 = vmatpush.msra.mxu0 %v2183
        %2439 = vmatpush.msra.mxu0 %v2182
        %2440 = vmatpush.msra.mxu0 %v2181
        %2441 = vmatpush.msra.mxu0 %v2180
        %2442 = vmatpush.msra.mxu0 %v2179
        %2443 = vmatpush.msra.mxu0 %v2178
        %2444 = vmatpush.msra.mxu0 %v2177
        %2445 = vmatpush.msra.mxu0 %v2176
        %2446 = vmatpush.msra.mxu0 %v2175
        %2447 = vmatpush.msra.mxu0 %v2174
        %2448 = vmatpush.msra.mxu0 %v2173
        %2449 = vmatpush.msra.mxu0 %v2172
        %2450 = vmatpush.msra.mxu0 %v2171
        %2451 = vmatpush.msra.mxu0 %v2170
        %2452 = vmatpush.msra.mxu0 %v2169
        %2453 = vmatpush.msra.mxu0 %v2168
        %2454 = vmatmul.f32.gmra.mxu0 %v2166
        %v2455 = vpop.f32.mrf.mxu0
        %v2456 = vadd.f32 %v2436, %v2455
        %2457 = vdwg.mxu0
        %2458 = vmatpush.msra.mxu0 %v2199
        %2459 = vmatpush.msra.mxu0 %v2198
        %2460 = vmatpush.msra.mxu0 %v2197
        %2461 = vmatpush.msra.mxu0 %v2196
        %2462 = vmatpush.msra.mxu0 %v2195
        %2463 = vmatpush.msra.mxu0 %v2194
        %2464 = vmatpush.msra.mxu0 %v2193
        %2465 = vmatpush.msra.mxu0 %v2192
        %2466 = vmatpush.msra.mxu0 %v2191
        %2467 = vmatpush.msra.mxu0 %v2190
        %2468 = vmatpush.msra.mxu0 %v2189
        %2469 = vmatpush.msra.mxu0 %v2188
        %2470 = vmatpush.msra.mxu0 %v2187
        %2471 = vmatpush.msra.mxu0 %v2186
        %2472 = vmatpush.msra.mxu0 %v2185
        %2473 = vmatpush.msra.mxu0 %v2184
        %2474 = vmatmul.f32.gmra.mxu0 %v2167
        %v2475 = vpop.f32.mrf.mxu0
        %v2476 = vadd.f32 %v2456, %v2475
        %2477 = vdwg.mxu0
        %v2478 = vld [vmem:[%s14] sm:$0x1]
        %v2480 = vperm.slane %v2478, 0
        %v2482 = vadd.f32 %v2476, %v2480
        %v2483 = vadd.f32 %v1342, %v2482
        %2484 = vst [vmem:[%s703] sm:$0xff] %v1981
        %2485 = vst [vmem:[%s703 + $0x8] sm:$0xff] %v2483
        %s2486 = sand.u32 %s392, 1
        %s2487 = scalar_lea.sflag [#allocation6], %s2486
        %s2488 = sand.u32 %s392, 1
        %s2489 = smul.addr %s2488, 16
        %s2490 = scalar_lea.vmem [#allocation19], %s2489
        // Predicated region
        $region121: #{tpu_custom_call.1} parent=79 // pred_check
          %p2491 = pneg %p402
        $region122: #{tpu_custom_call.1} parent=79 // pred_check_branch
          %2493 = sbr.rel (%p2491) target = $region124
        $region123: #{tpu_custom_call.1} parent=79 // pred_region
          %2495 = vsyncadd %s2487, 0
          %s2496 = smul.addr %s43, 2
          %s2497 = smul.addr %s42, 4
          %s2498 = sadd.s32 %s2496, %s2497
          %s2499 = smul.addr %s2498, 8
          %s2500 = scalar_lea.hbm %s15, %s2499
          %s2502 = sshll.u32 %s2490, 4
          %s2503 = int_to_ptr.vmem [resolvable:$true] %s2502
          %s2504 = sshll.u32 %s2500, 4
          %s2505 = int_to_ptr.hbm [resolvable:$true] %s2504
          %2507 = dma.vmem_to_hbm [thread:$0]  %s2503, 256, %s2505, %s2487
        $region124: #{tpu_custom_call.1} parent=79 // pred_fallthru
          _
      $region80: #{tpu_custom_call.1} parent=5 // pred_fallthru
        _
      %p2508 = scmp.le.s32.totalorder 2, %s33
      // Predicated region
      $region125: #{tpu_custom_call.1} parent=5 // pred_check
        %p2509 = pneg %p2508
      $region126: #{tpu_custom_call.1} parent=5 // pred_check_branch
        %2511 = sbr.rel (%p2509) target = $region128
      $region127: #{tpu_custom_call.1} parent=5 // pred_region
        %s2512 = ssub.s32 %s33, 2
        // Predicated region
        $region129: #{tpu_custom_call.1} parent=127 // pred_check
          %p2513 = pneg %p408
        $region130: #{tpu_custom_call.1} parent=127 // pred_check_branch
          %2515 = sbr.rel (%p2513) target = $region132
        $region131: #{tpu_custom_call.1} parent=127 // pred_region
          %s2516 = sand.u32 %s393, 1
          %s2517 = scalar_lea.sflag [#allocation6], %s2516
          %s2518 = sand.u32 %s393, 1
          %s2519 = smul.addr %s2518, 16
          %s2520 = scalar_lea.vmem [#allocation19], %s2519
          %2522 = dma.done %s2517, 256
        $region132: #{tpu_custom_call.1} parent=127 // pred_fallthru
          _
      $region128: #{tpu_custom_call.1} parent=5 // pred_fallthru
        _
    $region6: #{tpu_custom_call.1} parent=1 // loop_footer
      %s37 = sadd.s32 1, %s33
    $region7: #{tpu_custom_call.1} parent=1 // loop_footer_branch
      %32 = sbr.rel target = $region3
    $region8: #{tpu_custom_call.1} parent=1 // loop_exit
      _
    %2523 = vsyncpa [#allocation5], 1
    %s2524 = scalar_lea.sflag [#allocation5], 1
    %2525 = vsyncpa %s2524, 1
    %2526 = vsyncpa [#allocation8], 1
    %s2527 = scalar_lea.sflag [#allocation8], 1
    %2528 = vsyncpa %s2527, 1
    %2529 = vsyncpa [#allocation11], 1
    %2530 = vsyncpa [#allocation14], 1
    %2531 = vsyncpa [#allocation17], 1
    %2532 = vsyncpa [#allocation6], 1
    %s2533 = scalar_lea.sflag [#allocation6], 1
    %2534 = vsyncpa %s2533, 1

</llo_original>
